<compile_context>
chip_gen: v5e
topology: v5e:2x2
jax: 0.10.0
libtpu: 0.0.40
codegen_flags: <defaults>
</compile_context>

<pallas_src>
import functools

import jax
import jax.numpy as jnp
from jax import lax
from jax.experimental import pallas as pl
from jax.experimental.pallas import tpu as pltpu

ALPHA = 0.25  # focal loss alpha
GAMMA = 2.0   # focal loss gamma (== 2, hard-coded as a squared term below)


def _focal_loss_kernel(y_ref, locp_ref, loct_ref, clsp_ref,
                       loc_out_ref, cls_out_ref, pos_out_ref):
    """Element-wise partial sums, accumulated into per-core VMEM output slabs.

    y_ref:       (1, tile_n)  int32  labels (-1 ignore, 0 background, >0 fg)
    locp_ref:    (4, tile_n)  float  predicted locations (transposed)
    loct_ref:    (4, tile_n)  float  target locations (transposed)
    clsp_ref:    (C, tile_n)  float  class logits (transposed)
    loc_out_ref: (1, 4, tile_n) f32  per-core elementwise loc-loss accumulator
    cls_out_ref: (1, C, tile_n) f32  per-core elementwise cls-loss accumulator
    pos_out_ref: (1, 1, tile_n) f32  per-core positive-count accumulator
    """
    i = pl.program_id(1)  # inner ("arbitrary") reduction axis over N-tiles

    @pl.when(i == 0)
    def _init():
        loc_out_ref[...] = jnp.zeros_like(loc_out_ref)
        cls_out_ref[...] = jnp.zeros_like(cls_out_ref)
        pos_out_ref[...] = jnp.zeros_like(pos_out_ref)

    y = y_ref[...]                                    # (1, tile_n) int32
    pos = (y > 0).astype(jnp.float32)                 # (1, tile_n)
    valid = (y > -1).astype(jnp.float32)              # (1, tile_n)

    # ---- Smooth L1 over positive anchors (reduction='sum') ----
    d = locp_ref[...].astype(jnp.float32) - loct_ref[...].astype(jnp.float32)
    ad = jnp.abs(d)
    sl1 = jnp.where(ad < 1.0, 0.5 * d * d, ad - 0.5)  # (4, tile_n)
    loc_out_ref[...] += (sl1 * pos)[None]             # pos broadcasts over sublanes

    # ---- Focal loss (sigmoid BCE * focal weight) over valid anchors ----
    x = clsp_ref[...].astype(jnp.float32)             # (C, tile_n) logits
    # one_hot(y, 1+C)[:, 1:]  ==  (y == class_index + 1); class index on sublanes.
    cls_ids = lax.broadcasted_iota(jnp.int32, x.shape, 0) + 1
    t = (y == cls_ids).astype(jnp.float32)            # (C, tile_n)

    # Signed-logit fusion:  z = x*(1-2t);  pt = sigmoid(-z);  bce = softplus(z)
    z = x * (1.0 - 2.0 * t)
    e = jnp.exp(-jnp.abs(z))                          # 1 EUP exp
    inv = pl.reciprocal(1.0 + e, approx=True)         # EUP vrcp (cheap)
    pt = jnp.where(z > 0, e, 1.0) * inv               # numerically-stable sigmoid(-z)
    one_m_pt = 1.0 - pt
    w = ((1.0 - ALPHA) + (2.0 * ALPHA - 1.0) * t) * (one_m_pt * one_m_pt)
    bce = jnp.maximum(z, 0.0) + jnp.log1p(e)          # 1 EUP log1p
    cls_out_ref[...] += ((w * bce) * valid)[None]

    pos_out_ref[...] += pos[None]


@functools.partial(jax.jit, static_argnames=("num_classes", "tile_n", "ncores"))
def focal_loss_forward(loc_preds, loc_targets, cls_preds, cls_targets,
                       num_classes=20, tile_n=1024, ncores=2):
    """JAX/Pallas equivalent of FocalLoss.forward.

    loc_preds:   [B, A, 4]   float
    loc_targets: [B, A, 4]   float
    cls_preds:   [B, A, C]   float
    cls_targets: [B, A]      int  (-1 ignore, 0 background, 1..C foreground)
    """
    assert tile_n % 128 == 0, "tile_n must be a multiple of 128 (lane width)"
    B, A, _ = loc_preds.shape
    C = cls_preds.shape[-1]
    N = B * A

    # Lane-dense transposed layout: anchor axis -> lanes (last axis).
    # (Inputs are kept in their incoming float dtype; the kernel upcasts to
    #  f32 per tile, so bf16 detector outputs would halve HBM traffic.)
    locp = loc_preds.reshape(N, 4).T                  # (4, N)
    loct = loc_targets.reshape(N, 4).T                # (4, N)
    clsp = cls_preds.reshape(N, C).T                  # (C, N)
    y = cls_targets.reshape(1, N).astype(jnp.int32)   # (1, N)

    # Pad anchors to ncores * tiles_per_core * tile_n; padded labels are -1 so
    # they are masked out of every sum and contribute 0 to num_pos.
    tiles_per_core = (N + ncores * tile_n - 1) // (ncores * tile_n)
    n_pad = ncores * tiles_per_core * tile_n
    pad = n_pad - N
    if pad:
        locp = jnp.pad(locp, ((0, 0), (0, pad)))
        loct = jnp.pad(loct, ((0, 0), (0, pad)))
        clsp = jnp.pad(clsp, ((0, 0), (0, pad)))
        y = jnp.pad(y, ((0, 0), (0, pad)), constant_values=-1)

    def in_idx(c, i):  # global N-tile index = core * tiles_per_core + i
        return (0, c * tiles_per_core + i)

    out_loc, out_cls, out_pos = pl.pallas_call(
        _focal_loss_kernel,
        out_shape=(
            jax.ShapeDtypeStruct((ncores, 4, tile_n), jnp.float32),
            jax.ShapeDtypeStruct((ncores, C, tile_n), jnp.float32),
            jax.ShapeDtypeStruct((ncores, 1, tile_n), jnp.float32),
        ),
        grid_spec=pltpu.PrefetchScalarGridSpec(
            num_scalar_prefetch=0,
            grid=(ncores, tiles_per_core),
            in_specs=[
                pl.BlockSpec((1, tile_n), in_idx),
                pl.BlockSpec((4, tile_n), in_idx),
                pl.BlockSpec((4, tile_n), in_idx),
                pl.BlockSpec((C, tile_n), in_idx),
            ],
            out_specs=[
                pl.BlockSpec((1, 4, tile_n), lambda c, i: (c, 0, 0)),
                pl.BlockSpec((1, C, tile_n), lambda c, i: (c, 0, 0)),
                pl.BlockSpec((1, 1, tile_n), lambda c, i: (c, 0, 0)),
            ],
        ),
        compiler_params=pltpu.CompilerParams(
            # outer axis parallel (v7x megacore), inner reduction axis sequential
            dimension_semantics=("parallel", "arbitrary")),
    )(y, locp, loct, clsp)

    # Tiny final reduction of the per-core elementwise partials (JAX glue).
    loc_loss = jnp.sum(out_loc)
    cls_loss = jnp.sum(out_cls)
    num_pos = jnp.sum(out_pos)
    # TODO(synk): division yields NaN/Inf when num_pos == 0 (matches PyTorch).
    return (loc_loss + cls_loss) / num_pos


def _reference_forward(loc_preds, loc_targets, cls_preds, cls_targets,
                       num_classes=20):
    """Pure-JAX reference mirroring the PyTorch module (for verification)."""
    pos = cls_targets > 0
    num_pos = jnp.sum(pos).astype(jnp.float32)

    d = loc_preds - loc_targets
    ad = jnp.abs(d)
    sl1 = jnp.where(ad < 1.0, 0.5 * d * d, ad - 0.5)
    loc_loss = jnp.sum(sl1 * pos[..., None])

    pos_neg = cls_targets > -1
    t = jax.nn.one_hot(cls_targets, num_classes + 1)[..., 1:]
    x = cls_preds
    p = jax.nn.sigmoid(x)
    pt = p * t + (1.0 - p) * (1.0 - t)
    w = (ALPHA * t + (1.0 - ALPHA) * (1.0 - t)) * (1.0 - pt) ** 2
    bce = jnp.maximum(x, 0.0) - x * t + jnp.log1p(jnp.exp(-jnp.abs(x)))
    cls_loss = jnp.sum(w * bce * pos_neg[..., None])

    return (loc_loss + cls_loss) / num_pos


if __name__ == "__main__":
    B, A, NUM_CLASSES = 2, 24, 20  # small shapes; N = 48 anchors

    key = jax.random.PRNGKey(0)
    k1, k2, k3, k4 = jax.random.split(key, 4)
    loc_preds = jax.random.normal(k1, (B, A, 4), dtype=jnp.float32)
    loc_targets = jax.random.normal(k2, (B, A, 4), dtype=jnp.float32)
    cls_preds = jax.random.normal(k3, (B, A, NUM_CLASSES), dtype=jnp.float32)
    # labels in [-1, num_classes]; -1 = ignore, 0 = background, >0 = foreground
    cls_targets = jax.random.randint(k4, (B, A), -1, NUM_CLASSES + 1,
                                     dtype=jnp.int32)
    # guarantee a couple of positives so num_pos > 0 (deterministic)
    cls_targets = cls_targets.at[0, 0].set(3).at[1, 5].set(7)

    loss = focal_loss_forward(loc_preds, loc_targets, cls_preds, cls_targets,
                              num_classes=NUM_CLASSES)
    loss = jax.block_until_ready(loss)

    ref = _reference_forward(loc_preds, loc_targets, cls_preds, cls_targets,
                             num_classes=NUM_CLASSES)
    # approx reciprocal in the focal weight -> slightly looser tolerance
    assert jnp.allclose(loss, ref, rtol=2e-3, atol=1e-3), (loss, ref)

    print("KERNEL_OK")
</pallas_src>

<mosaic_0001>
module attributes {stable_mosaic.version = 11 : i64} {
  func.func @_focal_loss_kernel(%arg0: i32, %arg1: i32, %arg2: memref<1x1024xi32, #tpu.memory_space<vmem>>, %arg3: memref<4x1024xf32, #tpu.memory_space<vmem>>, %arg4: memref<4x1024xf32, #tpu.memory_space<vmem>>, %arg5: memref<20x1024xf32, #tpu.memory_space<vmem>>, %arg6: memref<1x4x1024xf32, #tpu.memory_space<vmem>>, %arg7: memref<1x20x1024xf32, #tpu.memory_space<vmem>>, %arg8: memref<1x1x1024xf32, #tpu.memory_space<vmem>>) attributes {dimension_semantics = [#tpu.dimension_semantics<parallel>, #tpu.dimension_semantics<arbitrary>], iteration_bounds = array<i64: 2, 1>, scalar_prefetch = 0 : i64, scratch_operands = 0 : i64, tpu.core_type = #tpu.core_type<tc>, window_params = [{transform_indices = @transform_0, window_bounds = array<i64: 1, 1024>}, {transform_indices = @transform_1, window_bounds = array<i64: 4, 1024>}, {transform_indices = @transform_2, window_bounds = array<i64: 4, 1024>}, {transform_indices = @transform_3, window_bounds = array<i64: 20, 1024>}, {transform_indices = @transform_4, window_bounds = array<i64: 1, 4, 1024>}, {transform_indices = @transform_5, window_bounds = array<i64: 1, 20, 1024>}, {transform_indices = @transform_6, window_bounds = array<i64: 1, 1, 1024>}]} {
    %c0_i32 = arith.constant 0 : i32
    %0 = arith.cmpi eq, %arg1, %c0_i32 : i32
    %1 = arith.extui %0 : i1 to i32
    %c0_i32_0 = arith.constant 0 : i32
    %2 = arith.cmpi ne, %1, %c0_i32_0 : i32
    scf.if %2 {
      %cst_39 = arith.constant 0.000000e+00 : f32
      %78 = vector.broadcast %cst_39 : f32 to vector<1x4x1024xf32>
      %c0_40 = arith.constant 0 : index
      %c0_41 = arith.constant 0 : index
      %c0_42 = arith.constant 0 : index
      %79 = vector.load %arg6[%c0_40, %c0_41, %c0_42] : memref<1x4x1024xf32, #tpu.memory_space<vmem>>, vector<1x4x1024xf32>
      tpu.vector_store %arg6[%c0_40, %c0_41, %c0_42], %78 {strides = array<i32>} : memref<1x4x1024xf32, #tpu.memory_space<vmem>>, vector<1x4x1024xf32>,
      %cst_43 = arith.constant 0.000000e+00 : f32
      %80 = vector.broadcast %cst_43 : f32 to vector<1x20x1024xf32>
      %c0_44 = arith.constant 0 : index
      %c0_45 = arith.constant 0 : index
      %c0_46 = arith.constant 0 : index
      %81 = vector.load %arg7[%c0_44, %c0_45, %c0_46] : memref<1x20x1024xf32, #tpu.memory_space<vmem>>, vector<1x20x1024xf32>
      tpu.vector_store %arg7[%c0_44, %c0_45, %c0_46], %80 {strides = array<i32>} : memref<1x20x1024xf32, #tpu.memory_space<vmem>>, vector<1x20x1024xf32>,
      %cst_47 = arith.constant 0.000000e+00 : f32
      %82 = vector.broadcast %cst_47 : f32 to vector<1x1x1024xf32>
      %c0_48 = arith.constant 0 : index
      %c0_49 = arith.constant 0 : index
      %c0_50 = arith.constant 0 : index
      %83 = vector.load %arg8[%c0_48, %c0_49, %c0_50] : memref<1x1x1024xf32, #tpu.memory_space<vmem>>, vector<1x1x1024xf32>
      tpu.vector_store %arg8[%c0_48, %c0_49, %c0_50], %82 {strides = array<i32>} : memref<1x1x1024xf32, #tpu.memory_space<vmem>>, vector<1x1x1024xf32>,
    } else {
    }
    %c0 = arith.constant 0 : index
    %c0_1 = arith.constant 0 : index
    %3 = vector.load %arg2[%c0, %c0_1] : memref<1x1024xi32, #tpu.memory_space<vmem>>, vector<1x1024xi32>
    %c0_i32_2 = arith.constant 0 : i32
    %4 = vector.broadcast %c0_i32_2 : i32 to vector<1x1024xi32>
    %5 = arith.cmpi sgt, %3, %4 : vector<1x1024xi32>
    %6 = arith.extui %5 : vector<1x1024xi1> to vector<1x1024xi32>
    %7 = arith.sitofp %6 : vector<1x1024xi32> to vector<1x1024xf32>
    %c-1_i32 = arith.constant -1 : i32
    %8 = vector.broadcast %c-1_i32 : i32 to vector<1x1024xi32>
    %9 = arith.cmpi sgt, %3, %8 : vector<1x1024xi32>
    %10 = arith.extui %9 : vector<1x1024xi1> to vector<1x1024xi32>
    %11 = arith.sitofp %10 : vector<1x1024xi32> to vector<1x1024xf32>
    %c0_3 = arith.constant 0 : index
    %c0_4 = arith.constant 0 : index
    %12 = vector.load %arg3[%c0_3, %c0_4] : memref<4x1024xf32, #tpu.memory_space<vmem>>, vector<4x1024xf32>
    %c0_5 = arith.constant 0 : index
    %c0_6 = arith.constant 0 : index
    %13 = vector.load %arg4[%c0_5, %c0_6] : memref<4x1024xf32, #tpu.memory_space<vmem>>, vector<4x1024xf32>
    %14 = arith.subf %12, %13 : vector<4x1024xf32>
    %15 = math.absf %14 : vector<4x1024xf32>
    %cst = arith.constant 1.000000e+00 : f32
    %16 = vector.broadcast %cst : f32 to vector<4x1024xf32>
    %17 = arith.cmpf olt, %15, %16 : vector<4x1024xf32>
    %cst_7 = arith.constant 5.000000e-01 : f32
    %18 = vector.broadcast %cst_7 : f32 to vector<4x1024xf32>
    %19 = arith.mulf %18, %14 : vector<4x1024xf32>
    %20 = arith.mulf %19, %14 : vector<4x1024xf32>
    %cst_8 = arith.constant 5.000000e-01 : f32
    %21 = vector.broadcast %cst_8 : f32 to vector<4x1024xf32>
    %22 = arith.subf %15, %21 : vector<4x1024xf32>
    %23 = arith.select %17, %20, %22 : vector<4x1024xi1>, vector<4x1024xf32>
    %c0_9 = arith.constant 0 : index
    %c0_10 = arith.constant 0 : index
    %c0_11 = arith.constant 0 : index
    %24 = vector.load %arg6[%c0_9, %c0_10, %c0_11] : memref<1x4x1024xf32, #tpu.memory_space<vmem>>, vector<1x4x1024xf32>
    %25 = vector.broadcast %7 : vector<1x1024xf32> to vector<4x1024xf32>
    %26 = arith.mulf %23, %25 : vector<4x1024xf32>
    %27 = vector.shape_cast %26 : vector<4x1024xf32> to vector<1x4x1024xf32>
    %28 = arith.addf %24, %27 : vector<1x4x1024xf32>
    %c0_12 = arith.constant 0 : index
    %c0_13 = arith.constant 0 : index
    %c0_14 = arith.constant 0 : index
    %29 = vector.load %arg6[%c0_12, %c0_13, %c0_14] : memref<1x4x1024xf32, #tpu.memory_space<vmem>>, vector<1x4x1024xf32>
    tpu.vector_store %arg6[%c0_12, %c0_13, %c0_14], %28 {strides = array<i32>} : memref<1x4x1024xf32, #tpu.memory_space<vmem>>, vector<1x4x1024xf32>,
    %c0_15 = arith.constant 0 : index
    %c0_16 = arith.constant 0 : index
    %30 = vector.load %arg5[%c0_15, %c0_16] : memref<20x1024xf32, #tpu.memory_space<vmem>>, vector<20x1024xf32>
    %31 = tpu.iota {dimensions = array<i32: 0>} : vector<20x1024xi32>
    %c1_i32 = arith.constant 1 : i32
    %32 = vector.broadcast %c1_i32 : i32 to vector<20x1024xi32>
    %33 = arith.addi %31, %32 : vector<20x1024xi32>
    %34 = vector.broadcast %3 : vector<1x1024xi32> to vector<20x1024xi32>
    %35 = arith.cmpi eq, %34, %33 : vector<20x1024xi32>
    %36 = arith.extui %35 : vector<20x1024xi1> to vector<20x1024xi32>
    %37 = arith.sitofp %36 : vector<20x1024xi32> to vector<20x1024xf32>
    %cst_17 = arith.constant 2.000000e+00 : f32
    %38 = vector.broadcast %cst_17 : f32 to vector<20x1024xf32>
    %39 = arith.mulf %38, %37 : vector<20x1024xf32>
    %cst_18 = arith.constant 1.000000e+00 : f32
    %40 = vector.broadcast %cst_18 : f32 to vector<20x1024xf32>
    %41 = arith.subf %40, %39 : vector<20x1024xf32>
    %42 = arith.mulf %30, %41 : vector<20x1024xf32>
    %43 = math.absf %42 : vector<20x1024xf32>
    %cst_19 = arith.constant 0.000000e+00 : f32
    %44 = vector.broadcast %cst_19 : f32 to vector<20x1024xf32>
    %45 = arith.subf %44, %43 : vector<20x1024xf32>
    %46 = math.exp %45 : vector<20x1024xf32>
    %cst_20 = arith.constant 1.000000e+00 : f32
    %47 = vector.broadcast %cst_20 : f32 to vector<20x1024xf32>
    %48 = arith.addf %47, %46 : vector<20x1024xf32>
    %49 = tpu.reciprocal %48 {approx = true} : vector<20x1024xf32> -> vector<20x1024xf32>
    %cst_21 = arith.constant 0.000000e+00 : f32
    %50 = vector.broadcast %cst_21 : f32 to vector<20x1024xf32>
    %51 = arith.cmpf ogt, %42, %50 : vector<20x1024xf32>
    %cst_22 = arith.constant 1.000000e+00 : f32
    %52 = vector.broadcast %cst_22 : f32 to vector<20x1024xf32>
    %53 = arith.select %51, %46, %52 : vector<20x1024xi1>, vector<20x1024xf32>
    %54 = arith.mulf %53, %49 : vector<20x1024xf32>
    %cst_23 = arith.constant 1.000000e+00 : f32
    %55 = vector.broadcast %cst_23 : f32 to vector<20x1024xf32>
    %56 = arith.subf %55, %54 : vector<20x1024xf32>
    %cst_24 = arith.constant -5.000000e-01 : f32
    %57 = vector.broadcast %cst_24 : f32 to vector<20x1024xf32>
    %58 = arith.mulf %57, %37 : vector<20x1024xf32>
    %cst_25 = arith.constant 7.500000e-01 : f32
    %59 = vector.broadcast %cst_25 : f32 to vector<20x1024xf32>
    %60 = arith.addf %59, %58 : vector<20x1024xf32>
    %61 = arith.mulf %56, %56 : vector<20x1024xf32>
    %62 = arith.mulf %60, %61 : vector<20x1024xf32>
    %cst_26 = arith.constant 0.000000e+00 : f32
    %63 = vector.broadcast %cst_26 : f32 to vector<20x1024xf32>
    %64 = arith.maximumf %42, %63 : vector<20x1024xf32>
    %65 = math.log1p %46 : vector<20x1024xf32>
    %66 = arith.addf %64, %65 : vector<20x1024xf32>
    %c0_27 = arith.constant 0 : index
    %c0_28 = arith.constant 0 : index
    %c0_29 = arith.constant 0 : index
    %67 = vector.load %arg7[%c0_27, %c0_28, %c0_29] : memref<1x20x1024xf32, #tpu.memory_space<vmem>>, vector<1x20x1024xf32>
    %68 = arith.mulf %62, %66 : vector<20x1024xf32>
    %69 = vector.broadcast %11 : vector<1x1024xf32> to vector<20x1024xf32>
    %70 = arith.mulf %68, %69 : vector<20x1024xf32>
    %71 = vector.shape_cast %70 : vector<20x1024xf32> to vector<1x20x1024xf32>
    %72 = arith.addf %67, %71 : vector<1x20x1024xf32>
    %c0_30 = arith.constant 0 : index
    %c0_31 = arith.constant 0 : index
    %c0_32 = arith.constant 0 : index
    %73 = vector.load %arg7[%c0_30, %c0_31, %c0_32] : memref<1x20x1024xf32, #tpu.memory_space<vmem>>, vector<1x20x1024xf32>
    tpu.vector_store %arg7[%c0_30, %c0_31, %c0_32], %72 {strides = array<i32>} : memref<1x20x1024xf32, #tpu.memory_space<vmem>>, vector<1x20x1024xf32>,
    %c0_33 = arith.constant 0 : index
    %c0_34 = arith.constant 0 : index
    %c0_35 = arith.constant 0 : index
    %74 = vector.load %arg8[%c0_33, %c0_34, %c0_35] : memref<1x1x1024xf32, #tpu.memory_space<vmem>>, vector<1x1x1024xf32>
    %75 = vector.shape_cast %7 : vector<1x1024xf32> to vector<1x1x1024xf32>
    %76 = arith.addf %74, %75 : vector<1x1x1024xf32>
    %c0_36 = arith.constant 0 : index
    %c0_37 = arith.constant 0 : index
    %c0_38 = arith.constant 0 : index
    %77 = vector.load %arg8[%c0_36, %c0_37, %c0_38] : memref<1x1x1024xf32, #tpu.memory_space<vmem>>, vector<1x1x1024xf32>
    tpu.vector_store %arg8[%c0_36, %c0_37, %c0_38], %76 {strides = array<i32>} : memref<1x1x1024xf32, #tpu.memory_space<vmem>>, vector<1x1x1024xf32>,
    return
  }
  func.func @transform_0(%arg0: i32, %arg1: i32) -> (i32, i32) {
    %c1_i32 = arith.constant 1 : i32
    %0 = arith.muli %arg0, %c1_i32 : i32
    %1 = arith.addi %0, %arg1 : i32
    %c0_i32 = arith.constant 0 : i32
    %c0_i32_0 = arith.constant 0 : i32
    return %c0_i32, %1 : i32, i32
  }
  func.func @transform_1(%arg0: i32, %arg1: i32) -> (i32, i32) {
    %c1_i32 = arith.constant 1 : i32
    %0 = arith.muli %arg0, %c1_i32 : i32
    %1 = arith.addi %0, %arg1 : i32
    %c0_i32 = arith.constant 0 : i32
    %c0_i32_0 = arith.constant 0 : i32
    return %c0_i32, %1 : i32, i32
  }
  func.func @transform_2(%arg0: i32, %arg1: i32) -> (i32, i32) {
    %c1_i32 = arith.constant 1 : i32
    %0 = arith.muli %arg0, %c1_i32 : i32
    %1 = arith.addi %0, %arg1 : i32
    %c0_i32 = arith.constant 0 : i32
    %c0_i32_0 = arith.constant 0 : i32
    return %c0_i32, %1 : i32, i32
  }
  func.func @transform_3(%arg0: i32, %arg1: i32) -> (i32, i32) {
    %c1_i32 = arith.constant 1 : i32
    %0 = arith.muli %arg0, %c1_i32 : i32
    %1 = arith.addi %0, %arg1 : i32
    %c0_i32 = arith.constant 0 : i32
    %c0_i32_0 = arith.constant 0 : i32
    return %c0_i32, %1 : i32, i32
  }
  func.func @transform_4(%arg0: i32, %arg1: i32) -> (i32, i32, i32) {
    %c0_i32 = arith.constant 0 : i32
    %c0_i32_0 = arith.constant 0 : i32
    %c0_i32_1 = arith.constant 0 : i32
    return %arg0, %c0_i32, %c0_i32_0 : i32, i32, i32
  }
  func.func @transform_5(%arg0: i32, %arg1: i32) -> (i32, i32, i32) {
    %c0_i32 = arith.constant 0 : i32
    %c0_i32_0 = arith.constant 0 : i32
    %c0_i32_1 = arith.constant 0 : i32
    return %arg0, %c0_i32, %c0_i32_0 : i32, i32, i32
  }
  func.func @transform_6(%arg0: i32, %arg1: i32) -> (i32, i32, i32) {
    %c0_i32 = arith.constant 0 : i32
    %c0_i32_0 = arith.constant 0 : i32
    %c0_i32_1 = arith.constant 0 : i32
    return %arg0, %c0_i32, %c0_i32_0 : i32, i32, i32
  }
}

</mosaic_0001>

<llo_original>
// kernel: focal_loss_forward.1
$region0: #{focal_loss_forward.1}
  #allocation0 [shape = 'u32[]', space=smem, size = 0x4, offset = 0x4, fixed_abs, tag = 'smem constant byte address 0x4 - core index']
  #allocation1 [shape = 'u32[72,128]{1,0:T(1,128)}', space=vmem, size = 0x9000, scoped, tag = 'internal scratch']
  %s0 = inlined_call_operand.vmem [shape: s32[1,2048], index: 0, kind: input, shape index: {}]
  %s1 = inlined_call_operand.vmem [shape: f32[4,2048], index: 1, kind: input, shape index: {}]
  %s2 = inlined_call_operand.vmem [shape: f32[4,2048], index: 2, kind: input, shape index: {}]
  %s3 = inlined_call_operand.vmem [shape: f32[20,2048], index: 3, kind: input, shape index: {}]
  %s4 = inlined_call_operand.vmem [shape: f32[2,4,1024], index: 4, kind: output, shape index: {0}]
  %s5 = inlined_call_operand.vmem [shape: f32[2,20,1024], index: 5, kind: output, shape index: {1}]
  %s6 = inlined_call_operand.vmem [shape: f32[2,1,1024], index: 6, kind: output, shape index: {2}]
  %7 = xla_tuple %s4, %s5, %s6
  %s8 = sld [smem:[#allocation0]]
  $region92: #{focal_loss_forward.1} parent=0
    _
  %s10 = ssub.s32 1, %s8
  %s11 = scalar_select 0, %s10, %s8
  $region1: #{focal_loss_forward.1} parent=0
    #allocation2 [shape = 'u8[196608]{0}', space=vmem, size = 0x30000, scoped, tag = 'input window, operand 3']
    loop: start=0, step=1, limit=4
    $region2: #{focal_loss_forward.1} parent=1 // loop_pre_header
      _
    $region3: #{focal_loss_forward.1} parent=1 // loop_header
      %s13 = sphi 0, %s17
      %p14 = scmp.ge.s32.totalorder %s13, 4
      %s20 = sphi 0, %s32
      %s21 = sphi 0, %s28
      %s22 = sphi 0, %s20
      %s23 = sphi 0, %s21
      %s24 = sphi 0, %s22
      %s25 = sphi 0, %s23
      %s37 = sphi 0, %s39
      %s40 = sphi 0, %s37
      %s41 = sphi 0, %s40
      %s57 = sphi 0, %s41
      %s65 = sphi 0, %s67
      %s68 = sphi 0, %s65
      %s69 = sphi 0, %s68
      %s85 = sphi 0, %s69
      %s93 = sphi 0, %s95
      %s96 = sphi 0, %s93
      %s97 = sphi 0, %s96
      %s113 = sphi 0, %s97
      %s121 = sphi 0, %s123
      %s124 = sphi 0, %s121
      %s125 = sphi 0, %s124
      %s141 = sphi 0, %s125
      %s147 = sphi 0, %s149
      %s150 = sphi 0, %s147
      %s151 = sphi 0, %s150
      %s167 = sphi 0, %s151
      %s173 = sphi 0, %s175
      %s176 = sphi 0, %s173
      %s177 = sphi 0, %s176
      %s193 = sphi 0, %s177
      %s199 = sphi 0, %s201
      %s202 = sphi 0, %s199
      %s203 = sphi 0, %s202
      %s219 = sphi 0, %s203
    $region4: #{focal_loss_forward.1} parent=1 // loop_header_branch
      %16 = sbr.rel (%p14) target = $region8
    $region5: #{focal_loss_forward.1} parent=1 // loop_body
      %s18 = ssub.s32 %s13, 1
      %s19 = ssub.s32 %s13, 2
      %s26 = sadd.s32 1, %s21
      %p27 = scmp.ge.s32.totalorder %s26, 1
      %s28 = scalar_select %p27, 0, %s26
      %s29 = sadd.s32 1, %s20
      %s30 = scalar_select %p27, %s29, %s20
      %p31 = scmp.ge.s32.totalorder %s30, 2
      %s32 = scalar_select %p31, 0, %s30
      %s33 = sadd.s32 %s20, %s21
      %s34 = sadd.s32 %s32, %s28
      %s35 = ssub.s32 %s33, %s34
      %p36 = scmp.eq.s32.totalorder %s35, 0
      %s38 = sadd.s32 %s37, 1
      %s39 = scalar_select %p36, %s37, %s38
      %p42 = pneg %p36
      %p43 = scmp.eq.s32.totalorder %s13, 1
      %p44 = por %p42, %p43
      %p45 = scmp.ne.s32.totalorder %s37, %s40
      %p46 = scmp.eq.s32.totalorder %s13, 0
      %p47 = por %p45, %p46
      %p48 = scmp.ne.s32.totalorder %s37, %s40
      %p49 = scmp.eq.s32.totalorder %s18, 1
      %p50 = por %p48, %p49
      %p51 = scmp.ne.s32.totalorder %s40, %s41
      %p52 = scmp.eq.s32.totalorder %s18, 0
      %p53 = por %p51, %p52
      %p54 = scmp.ne.s32.totalorder %s40, %s41
      %p55 = scmp.eq.s32.totalorder %s19, 1
      %p56 = por %p54, %p55
      %p58 = scmp.ne.s32.totalorder %s41, %s57
      %p59 = scmp.eq.s32.totalorder %s19, 0
      %p60 = por %p58, %p59
      %s61 = sadd.s32 %s20, %s21
      %s62 = sadd.s32 %s32, %s28
      %s63 = ssub.s32 %s61, %s62
      %p64 = scmp.eq.s32.totalorder %s63, 0
      %s66 = sadd.s32 %s65, 1
      %s67 = scalar_select %p64, %s65, %s66
      %p70 = pneg %p64
      %p71 = scmp.eq.s32.totalorder %s13, 1
      %p72 = por %p70, %p71
      %p73 = scmp.ne.s32.totalorder %s65, %s68
      %p74 = scmp.eq.s32.totalorder %s13, 0
      %p75 = por %p73, %p74
      %p76 = scmp.ne.s32.totalorder %s65, %s68
      %p77 = scmp.eq.s32.totalorder %s18, 1
      %p78 = por %p76, %p77
      %p79 = scmp.ne.s32.totalorder %s68, %s69
      %p80 = scmp.eq.s32.totalorder %s18, 0
      %p81 = por %p79, %p80
      %p82 = scmp.ne.s32.totalorder %s68, %s69
      %p83 = scmp.eq.s32.totalorder %s19, 1
      %p84 = por %p82, %p83
      %p86 = scmp.ne.s32.totalorder %s69, %s85
      %p87 = scmp.eq.s32.totalorder %s19, 0
      %p88 = por %p86, %p87
      %s89 = sadd.s32 %s20, %s21
      %s90 = sadd.s32 %s32, %s28
      %s91 = ssub.s32 %s89, %s90
      %p92 = scmp.eq.s32.totalorder %s91, 0
      %s94 = sadd.s32 %s93, 1
      %s95 = scalar_select %p92, %s93, %s94
      %p98 = pneg %p92
      %p99 = scmp.eq.s32.totalorder %s13, 1
      %p100 = por %p98, %p99
      %p101 = scmp.ne.s32.totalorder %s93, %s96
      %p102 = scmp.eq.s32.totalorder %s13, 0
      %p103 = por %p101, %p102
      %p104 = scmp.ne.s32.totalorder %s93, %s96
      %p105 = scmp.eq.s32.totalorder %s18, 1
      %p106 = por %p104, %p105
      %p107 = scmp.ne.s32.totalorder %s96, %s97
      %p108 = scmp.eq.s32.totalorder %s18, 0
      %p109 = por %p107, %p108
      %p110 = scmp.ne.s32.totalorder %s96, %s97
      %p111 = scmp.eq.s32.totalorder %s19, 1
      %p112 = por %p110, %p111
      %p114 = scmp.ne.s32.totalorder %s97, %s113
      %p115 = scmp.eq.s32.totalorder %s19, 0
      %p116 = por %p114, %p115
      %s117 = sadd.s32 %s20, %s21
      %s118 = sadd.s32 %s32, %s28
      %s119 = ssub.s32 %s117, %s118
      %p120 = scmp.eq.s32.totalorder %s119, 0
      %s122 = sadd.s32 %s121, 1
      %s123 = scalar_select %p120, %s121, %s122
      %p126 = pneg %p120
      %p127 = scmp.eq.s32.totalorder %s13, 1
      %p128 = por %p126, %p127
      %p129 = scmp.ne.s32.totalorder %s121, %s124
      %p130 = scmp.eq.s32.totalorder %s13, 0
      %p131 = por %p129, %p130
      %p132 = scmp.ne.s32.totalorder %s121, %s124
      %p133 = scmp.eq.s32.totalorder %s18, 1
      %p134 = por %p132, %p133
      %p135 = scmp.ne.s32.totalorder %s124, %s125
      %p136 = scmp.eq.s32.totalorder %s18, 0
      %p137 = por %p135, %p136
      %p138 = scmp.ne.s32.totalorder %s124, %s125
      %p139 = scmp.eq.s32.totalorder %s19, 1
      %p140 = por %p138, %p139
      %p142 = scmp.ne.s32.totalorder %s125, %s141
      %p143 = scmp.eq.s32.totalorder %s19, 0
      %p144 = por %p142, %p143
      %s145 = ssub.s32 %s20, %s32
      %p146 = scmp.eq.s32.totalorder %s145, 0
      %s148 = sadd.s32 %s147, 1
      %s149 = scalar_select %p146, %s147, %s148
      %p152 = pneg %p146
      %p153 = scmp.eq.s32.totalorder %s13, 1
      %p154 = por %p152, %p153
      %p155 = scmp.ne.s32.totalorder %s147, %s150
      %p156 = scmp.eq.s32.totalorder %s13, 0
      %p157 = por %p155, %p156
      %p158 = scmp.ne.s32.totalorder %s147, %s150
      %p159 = scmp.eq.s32.totalorder %s18, 1
      %p160 = por %p158, %p159
      %p161 = scmp.ne.s32.totalorder %s150, %s151
      %p162 = scmp.eq.s32.totalorder %s18, 0
      %p163 = por %p161, %p162
      %p164 = scmp.ne.s32.totalorder %s150, %s151
      %p165 = scmp.eq.s32.totalorder %s19, 1
      %p166 = por %p164, %p165
      %p168 = scmp.ne.s32.totalorder %s151, %s167
      %p169 = scmp.eq.s32.totalorder %s19, 0
      %p170 = por %p168, %p169
      %s171 = ssub.s32 %s20, %s32
      %p172 = scmp.eq.s32.totalorder %s171, 0
      %s174 = sadd.s32 %s173, 1
      %s175 = scalar_select %p172, %s173, %s174
      %p178 = pneg %p172
      %p179 = scmp.eq.s32.totalorder %s13, 1
      %p180 = por %p178, %p179
      %p181 = scmp.ne.s32.totalorder %s173, %s176
      %p182 = scmp.eq.s32.totalorder %s13, 0
      %p183 = por %p181, %p182
      %p184 = scmp.ne.s32.totalorder %s173, %s176
      %p185 = scmp.eq.s32.totalorder %s18, 1
      %p186 = por %p184, %p185
      %p187 = scmp.ne.s32.totalorder %s176, %s177
      %p188 = scmp.eq.s32.totalorder %s18, 0
      %p189 = por %p187, %p188
      %p190 = scmp.ne.s32.totalorder %s176, %s177
      %p191 = scmp.eq.s32.totalorder %s19, 1
      %p192 = por %p190, %p191
      %p194 = scmp.ne.s32.totalorder %s177, %s193
      %p195 = scmp.eq.s32.totalorder %s19, 0
      %p196 = por %p194, %p195
      %s197 = ssub.s32 %s20, %s32
      %p198 = scmp.eq.s32.totalorder %s197, 0
      %s200 = sadd.s32 %s199, 1
      %s201 = scalar_select %p198, %s199, %s200
      %p204 = pneg %p198
      %p205 = scmp.eq.s32.totalorder %s13, 1
      %p206 = por %p204, %p205
      %p207 = scmp.ne.s32.totalorder %s199, %s202
      %p208 = scmp.eq.s32.totalorder %s13, 0
      %p209 = por %p207, %p208
      %p210 = scmp.ne.s32.totalorder %s199, %s202
      %p211 = scmp.eq.s32.totalorder %s18, 1
      %p212 = por %p210, %p211
      %p213 = scmp.ne.s32.totalorder %s202, %s203
      %p214 = scmp.eq.s32.totalorder %s18, 0
      %p215 = por %p213, %p214
      %p216 = scmp.ne.s32.totalorder %s202, %s203
      %p217 = scmp.eq.s32.totalorder %s19, 1
      %p218 = por %p216, %p217
      %p220 = scmp.ne.s32.totalorder %s203, %s219
      %p221 = scmp.eq.s32.totalorder %s19, 0
      %p222 = por %p220, %p221
      %p223 = scmp.le.s32.totalorder 1, %s13
      %p224 = scmp.lt.s32.totalorder %s13, 3
      %p225 = pnand %p223, %p224
      %p226 = pneg %p225
      // Predicated region
      $region9: #{focal_loss_forward.1} parent=5 // pred_check
        _
      $region10: #{focal_loss_forward.1} parent=5 // pred_check_branch
        %228 = sbr.rel (%p225) target = $region12
      $region11: #{focal_loss_forward.1} parent=5 // pred_region
        %s229 = ssub.s32 %s13, 1
      $region12: #{focal_loss_forward.1} parent=5 // pred_fallthru
        _
      %p230 = scmp.lt.s32.totalorder %s13, 2
      // Predicated region
      $region13: #{focal_loss_forward.1} parent=5 // pred_check
        %p231 = pneg %p230
      $region14: #{focal_loss_forward.1} parent=5 // pred_check_branch
        %233 = sbr.rel (%p231) target = $region16
      $region15: #{focal_loss_forward.1} parent=5 // pred_region
        // Predicated region
        $region17: #{focal_loss_forward.1} parent=15 // pred_check
          %p234 = pneg %p47
        $region18: #{focal_loss_forward.1} parent=15 // pred_check_branch
          %236 = sbr.rel (%p234) target = $region20
        $region19: #{focal_loss_forward.1} parent=15 // pred_region
          %s237 = sadd.s32 %s20, %s21
          %s238 = smul.u32 8, %s237
          %p239 = scmp.lt.s32.totalorder %s238, 15
          %s240 = scalar_select %p239, %s238, 15
          %s241 = scalar_lea.vmem %s0, %s240
          %s242 = sadd.s32 %s20, %s21
          %s243 = smul.u32 8, %s242
        $region20: #{focal_loss_forward.1} parent=15 // pred_fallthru
          _
        // Predicated region
        $region21: #{focal_loss_forward.1} parent=15 // pred_check
          %p244 = pneg %p75
        $region22: #{focal_loss_forward.1} parent=15 // pred_check_branch
          %246 = sbr.rel (%p244) target = $region24
        $region23: #{focal_loss_forward.1} parent=15 // pred_region
          %s247 = sadd.s32 %s20, %s21
          %s248 = smul.u32 8, %s247
          %p249 = scmp.lt.s32.totalorder %s248, 15
          %s250 = scalar_select %p249, %s248, 15
          %s251 = smul.addr %s250, 4
          %s252 = scalar_lea.vmem %s1, %s251
          %s253 = sadd.s32 %s20, %s21
          %s254 = smul.u32 8, %s253
        $region24: #{focal_loss_forward.1} parent=15 // pred_fallthru
          _
        // Predicated region
        $region25: #{focal_loss_forward.1} parent=15 // pred_check
          %p255 = pneg %p103
        $region26: #{focal_loss_forward.1} parent=15 // pred_check_branch
          %257 = sbr.rel (%p255) target = $region28
        $region27: #{focal_loss_forward.1} parent=15 // pred_region
          %s258 = sadd.s32 %s20, %s21
          %s259 = smul.u32 8, %s258
          %p260 = scmp.lt.s32.totalorder %s259, 15
          %s261 = scalar_select %p260, %s259, 15
          %s262 = smul.addr %s261, 4
          %s263 = scalar_lea.vmem %s2, %s262
          %s264 = sadd.s32 %s20, %s21
          %s265 = smul.u32 8, %s264
        $region28: #{focal_loss_forward.1} parent=15 // pred_fallthru
          _
        // Predicated region
        $region29: #{focal_loss_forward.1} parent=15 // pred_check
          %p266 = pneg %p131
        $region30: #{focal_loss_forward.1} parent=15 // pred_check_branch
          %268 = sbr.rel (%p266) target = $region32
        $region31: #{focal_loss_forward.1} parent=15 // pred_region
          %s269 = sand.u32 %s121, 1
          %s270 = sand.u32 %s121, 1
          %s271 = smul.addr %s270, 192
          %s272 = scalar_lea.vmem [#allocation2], %s271
          %s273 = sadd.s32 %s20, %s21
          %s274 = smul.u32 8, %s273
          %s275 = smul.addr %s274, 8
          %s276 = scalar_lea.vmem %s3, %s275
          // Predicated region
          $region33: #{focal_loss_forward.1} parent=31 // pred_check
            _
          $region34: #{focal_loss_forward.1} parent=31 // pred_check_branch
            %278 = sbr.rel (0) target = $region36
          $region35: #{focal_loss_forward.1} parent=31 // pred_region
            // Predicated region
            $region37: #{focal_loss_forward.1} parent=35 // pred_check
              _
            $region38: #{focal_loss_forward.1} parent=35 // pred_check_branch
              %280 = sbr.rel (0) target = $region40
            $region39: #{focal_loss_forward.1} parent=35 // pred_region
              loop: start=0, step=1, limit=1
              $region41: #{focal_loss_forward.1} parent=39 // loop_pre_header
                _
              $region42: #{focal_loss_forward.1} parent=39 // loop_header
                %s282 = sphi 0, %s286
                %p283 = scmp.ge.s32.totalorder %s282, 1
                %s287 = sphi %s276, %s276
                %s288 = sphi %s272, %s272
              $region43: #{focal_loss_forward.1} parent=39 // loop_header_branch
                %285 = sbr.rel (%p283) target = $region47
              $region44: #{focal_loss_forward.1} parent=39 // loop_body
                %v289 = vld [vmem:[%s287] sm:$0xff]
                %290 = vst [vmem:[%s288] sm:$0xff] %v289
                %v291 = vld [vmem:[%s287 + $0x8] sm:$0xff]
                %292 = vst [vmem:[%s288 + $0x8] sm:$0xff] %v291
                %v293 = vld [vmem:[%s287 + $0x10] sm:$0xff]
                %294 = vst [vmem:[%s288 + $0x10] sm:$0xff] %v293
                %v295 = vld [vmem:[%s287 + $0x18] sm:$0xff]
                %296 = vst [vmem:[%s288 + $0x18] sm:$0xff] %v295
                %v297 = vld [vmem:[%s287 + $0x20] sm:$0xff]
                %298 = vst [vmem:[%s288 + $0x20] sm:$0xff] %v297
                %v299 = vld [vmem:[%s287 + $0x28] sm:$0xff]
                %300 = vst [vmem:[%s288 + $0x28] sm:$0xff] %v299
                %v301 = vld [vmem:[%s287 + $0x30] sm:$0xff]
                %302 = vst [vmem:[%s288 + $0x30] sm:$0xff] %v301
                %v303 = vld [vmem:[%s287 + $0x38] sm:$0xff]
                %304 = vst [vmem:[%s288 + $0x38] sm:$0xff] %v303
                %v305 = vld [vmem:[%s287 + $0x80] sm:$0xff]
                %306 = vst [vmem:[%s288 + $0x40] sm:$0xff] %v305
                %v307 = vld [vmem:[%s287 + $0x88] sm:$0xff]
                %308 = vst [vmem:[%s288 + $0x48] sm:$0xff] %v307
                %v309 = vld [vmem:[%s287 + $0x90] sm:$0xff]
                %310 = vst [vmem:[%s288 + $0x50] sm:$0xff] %v309
                %v311 = vld [vmem:[%s287 + $0x98] sm:$0xff]
                %312 = vst [vmem:[%s288 + $0x58] sm:$0xff] %v311
                %v313 = vld [vmem:[%s287 + $0xa0] sm:$0xff]
                %314 = vst [vmem:[%s288 + $0x60] sm:$0xff] %v313
                %v315 = vld [vmem:[%s287 + $0xa8] sm:$0xff]
                %316 = vst [vmem:[%s288 + $0x68] sm:$0xff] %v315
                %v317 = vld [vmem:[%s287 + $0xb0] sm:$0xff]
                %318 = vst [vmem:[%s288 + $0x70] sm:$0xff] %v317
                %v319 = vld [vmem:[%s287 + $0xb8] sm:$0xff]
                %320 = vst [vmem:[%s288 + $0x78] sm:$0xff] %v319
                %v321 = vld [vmem:[%s287 + $0x100] sm:$0xff]
                %322 = vst [vmem:[%s288 + $0x80] sm:$0xff] %v321
                %v323 = vld [vmem:[%s287 + $0x108] sm:$0xff]
                %324 = vst [vmem:[%s288 + $0x88] sm:$0xff] %v323
                %v325 = vld [vmem:[%s287 + $0x110] sm:$0xff]
                %326 = vst [vmem:[%s288 + $0x90] sm:$0xff] %v325
                %v327 = vld [vmem:[%s287 + $0x118] sm:$0xff]
                %328 = vst [vmem:[%s288 + $0x98] sm:$0xff] %v327
                %v329 = vld [vmem:[%s287 + $0x120] sm:$0xff]
                %330 = vst [vmem:[%s288 + $0xa0] sm:$0xff] %v329
                %v331 = vld [vmem:[%s287 + $0x128] sm:$0xff]
                %332 = vst [vmem:[%s288 + $0xa8] sm:$0xff] %v331
                %v333 = vld [vmem:[%s287 + $0x130] sm:$0xff]
                %334 = vst [vmem:[%s288 + $0xb0] sm:$0xff] %v333
                %v335 = vld [vmem:[%s287 + $0x138] sm:$0xff]
                %336 = vst [vmem:[%s288 + $0xb8] sm:$0xff] %v335
              $region45: #{focal_loss_forward.1} parent=39 // loop_footer
                %s286 = sadd.s32 1, %s282
              $region46: #{focal_loss_forward.1} parent=39 // loop_footer_branch
                %281 = sbr.rel target = $region42
              $region47: #{focal_loss_forward.1} parent=39 // loop_exit
                _
            $region40: #{focal_loss_forward.1} parent=35 // pred_fallthru
              _
            // Predicated region
            $region48: #{focal_loss_forward.1} parent=35 // pred_check
              _
            $region49: #{focal_loss_forward.1} parent=35 // pred_check_branch
              %338 = sbr.rel target = $region51
            $region50: #{focal_loss_forward.1} parent=35 // pred_region
              _
            $region51: #{focal_loss_forward.1} parent=35 // pred_fallthru
              _
          $region36: #{focal_loss_forward.1} parent=31 // pred_fallthru
            _
          %339 = vnop
        $region32: #{focal_loss_forward.1} parent=15 // pred_fallthru
          _
      $region16: #{focal_loss_forward.1} parent=5 // pred_fallthru
        _
      %p340 = scmp.le.s32.totalorder 1, %s13
      %p341 = scmp.lt.s32.totalorder %s13, 3
      %p342 = pnand %p340, %p341
      %p343 = pneg %p342
      // Predicated region
      $region52: #{focal_loss_forward.1} parent=5 // pred_check
        _
      $region53: #{focal_loss_forward.1} parent=5 // pred_check_branch
        %345 = sbr.rel (%p342) target = $region55
      $region54: #{focal_loss_forward.1} parent=5 // pred_region
        %s346 = ssub.s32 %s13, 1
        %s347 = sand.u32 %s124, 1
        %s348 = sand.u32 %s124, 1
        %s349 = smul.addr %s348, 192
        %s350 = scalar_lea.vmem [#allocation2], %s349
        // Predicated region
        $region56: #{focal_loss_forward.1} parent=54 // pred_check
          %p351 = pneg %p137
        $region57: #{focal_loss_forward.1} parent=54 // pred_check_branch
          %353 = sbr.rel (%p351) target = $region59
        $region58: #{focal_loss_forward.1} parent=54 // pred_region
          _
        $region59: #{focal_loss_forward.1} parent=54 // pred_fallthru
          _
        %s354 = sadd.s32 %s22, %s23
        %s355 = smul.u32 8, %s354
        %p356 = scmp.lt.s32.totalorder %s355, 15
        %s357 = scalar_select %p356, %s355, 15
        %s358 = scalar_lea.vmem %s0, %s357
        %p359 = pneg %p53
        %p360 = pneg %p50
        %s361 = sadd.s32 %s22, %s23
        %s362 = smul.u32 8, %s361
        %p363 = scmp.lt.s32.totalorder %s362, 15
        %s364 = scalar_select %p363, %s362, 15
        %s365 = smul.addr %s364, 4
        %s366 = scalar_lea.vmem %s1, %s365
        %p367 = pneg %p81
        %p368 = pneg %p78
        %s369 = sadd.s32 %s22, %s23
        %s370 = smul.u32 8, %s369
        %p371 = scmp.lt.s32.totalorder %s370, 15
        %s372 = scalar_select %p371, %s370, 15
        %s373 = smul.addr %s372, 4
        %s374 = scalar_lea.vmem %s2, %s373
        %p375 = pneg %p109
        %p376 = pneg %p106
        %s377 = sand.u32 %s124, 1
        %s378 = sand.u32 %s124, 1
        %s379 = smul.addr %s378, 192
        %s380 = scalar_lea.vmem [#allocation2], %s379
        %p381 = pneg %p137
        %p382 = pneg %p134
        %p383 = pneg %p163
        %p384 = pneg %p160
        %p385 = scmp.lt.s32.totalorder %s22, 1
        %s386 = scalar_select %p385, %s22, 1
        %s387 = smul.addr %s386, 8
        %s388 = smul.addr %s387, 4
        %s389 = scalar_lea.vmem %s4, %s388
        %p390 = pneg %p189
        %p391 = pneg %p186
        %p392 = scmp.lt.s32.totalorder %s22, 1
        %s393 = scalar_select %p392, %s22, 1
        %s394 = smul.addr %s393, 24
        %s395 = smul.addr %s394, 8
        %s396 = scalar_lea.vmem %s5, %s395
        %p397 = pneg %p215
        %p398 = pneg %p212
        %p399 = scmp.lt.s32.totalorder %s22, 1
        %s400 = scalar_select %p399, %s22, 1
        %s401 = smul.addr %s400, 8
        %s402 = scalar_lea.vmem %s6, %s401
        %s403 = sadd.s32 %s22, %s23
        %s404 = smul.u32 8, %s403
        %p405 = scmp.lt.s32.totalorder %s404, 15
        %s406 = scalar_select %p405, %s404, 15
        %s407 = scalar_lea.vmem %s0, %s406
        %s408 = sadd.s32 %s22, %s23
        %s409 = smul.u32 8, %s408
        %s410 = sadd.s32 %s22, %s23
        %s411 = smul.u32 8, %s410
        %p412 = scmp.lt.s32.totalorder %s411, 15
        %s413 = scalar_select %p412, %s411, 15
        %s414 = smul.addr %s413, 4
        %s415 = scalar_lea.vmem %s1, %s414
        %s416 = sadd.s32 %s22, %s23
        %s417 = smul.u32 8, %s416
        %s418 = sadd.s32 %s22, %s23
        %s419 = smul.u32 8, %s418
        %p420 = scmp.lt.s32.totalorder %s419, 15
        %s421 = scalar_select %p420, %s419, 15
        %s422 = smul.addr %s421, 4
        %s423 = scalar_lea.vmem %s2, %s422
        %s424 = sadd.s32 %s22, %s23
        %s425 = smul.u32 8, %s424
        %s426 = sadd.s32 %s22, %s23
        %s427 = smul.u32 8, %s426
        %p428 = scmp.lt.s32.totalorder %s22, 1
        %s429 = scalar_select %p428, %s22, 1
        %s430 = smul.addr %s429, 8
        %s431 = smul.addr %s430, 4
        %s432 = scalar_lea.vmem %s4, %s431
        %p433 = scmp.lt.s32.totalorder %s22, 1
        %s434 = scalar_select %p433, %s22, 1
        %s435 = smul.addr %s434, 24
        %s436 = smul.addr %s435, 8
        %s437 = scalar_lea.vmem %s5, %s436
        %p438 = scmp.lt.s32.totalorder %s22, 1
        %s439 = scalar_select %p438, %s22, 1
        %s440 = smul.addr %s439, 8
        %s441 = scalar_lea.vmem %s6, %s440
        %p442 = scmp.eq.s32.totalorder %s23, 0
        // Predicated region
        $region60: #{focal_loss_forward.1} parent=54 // pred_check
          %p443 = pneg %p442
        $region61: #{focal_loss_forward.1} parent=54 // pred_check_branch
          %445 = sbr.rel (%p443) target = $region63
        $region62: #{focal_loss_forward.1} parent=54 // pred_region
          %446 = vst [vmem:[%s432] sm:$0xff] 0.0
          %447 = vst [vmem:[%s432 + $0x8] sm:$0xff] 0.0
          %448 = vst [vmem:[%s432 + $0x10] sm:$0xff] 0.0
          %449 = vst [vmem:[%s432 + $0x18] sm:$0xff] 0.0
          %450 = vst [vmem:[%s437] sm:$0xff] 0.0
          %451 = vst [vmem:[%s437 + $0x8] sm:$0xff] 0.0
          %452 = vst [vmem:[%s437 + $0x10] sm:$0xff] 0.0
          %453 = vst [vmem:[%s437 + $0x18] sm:$0xff] 0.0
          %454 = vst [vmem:[%s437 + $0x20] sm:$0xff] 0.0
          %455 = vst [vmem:[%s437 + $0x28] sm:$0xff] 0.0
          %456 = vst [vmem:[%s437 + $0x30] sm:$0xff] 0.0
          %457 = vst [vmem:[%s437 + $0x38] sm:$0xff] 0.0
          %458 = vst [vmem:[%s437 + $0x40] sm:$0xff] 0.0
          %459 = vst [vmem:[%s437 + $0x48] sm:$0xff] 0.0
          %460 = vst [vmem:[%s437 + $0x50] sm:$0xff] 0.0
          %461 = vst [vmem:[%s437 + $0x58] sm:$0xff] 0.0
          %462 = vst [vmem:[%s437 + $0x60] sm:$0xff] 0.0
          %463 = vst [vmem:[%s437 + $0x68] sm:$0xff] 0.0
          %464 = vst [vmem:[%s437 + $0x70] sm:$0xff] 0.0
          %465 = vst [vmem:[%s437 + $0x78] sm:$0xff] 0.0
          %466 = vst [vmem:[%s437 + $0x80] sm:$0xf] 0.0
          %467 = vst [vmem:[%s437 + $0x88] sm:$0xf] 0.0
          %468 = vst [vmem:[%s437 + $0x90] sm:$0xf] 0.0
          %469 = vst [vmem:[%s437 + $0x98] sm:$0xf] 0.0
          %470 = vst [vmem:[%s437 + $0xa0] sm:$0xf] 0.0
          %471 = vst [vmem:[%s437 + $0xa8] sm:$0xf] 0.0
          %472 = vst [vmem:[%s437 + $0xb0] sm:$0xf] 0.0
          %473 = vst [vmem:[%s437 + $0xb8] sm:$0xf] 0.0
          %474 = vst [vmem:[%s441] sm:$0xff] 0.0
        $region63: #{focal_loss_forward.1} parent=54 // pred_fallthru
          _
        %v475 = vld [vmem:[%s407] sm:$0xff]
        %vm476 = vcmp.gt.s32.totalorder %v475, 0
        %v477 = vsel %vm476, 1, 0
        %v478 = vcvt.s32.f32 %v477
        %vm479 = vcmp.gt.s32.totalorder %v475, 4294967295
        %v480 = vsel %vm479, 1, 0
        %v481 = vcvt.s32.f32 %v480
        %v482 = vld [vmem:[%s415] sm:$0xff]
        %v483 = vld [vmem:[%s415 + $0x8] sm:$0xff]
        %v484 = vld [vmem:[%s415 + $0x10] sm:$0xff]
        %v485 = vld [vmem:[%s415 + $0x18] sm:$0xff]
        %v486 = vld [vmem:[%s423] sm:$0xff]
        %v487 = vld [vmem:[%s423 + $0x8] sm:$0xff]
        %v488 = vld [vmem:[%s423 + $0x10] sm:$0xff]
        %v489 = vld [vmem:[%s423 + $0x18] sm:$0xff]
        %v490 = vsub.f32 %v482, %v486
        %v491 = vsub.f32 %v483, %v487
        %v492 = vsub.f32 %v484, %v488
        %v493 = vsub.f32 %v485, %v489
        %v494 = vand.u32 2147483647, %v490
        %v495 = vand.u32 2147483647, %v491
        %v496 = vand.u32 2147483647, %v492
        %v497 = vand.u32 2147483647, %v493
        %vm498 = vcmp.lt.f32.partialorder %v494, 1.0
        %vm499 = vcmp.lt.f32.partialorder %v495, 1.0
        %vm500 = vcmp.lt.f32.partialorder %v496, 1.0
        %vm501 = vcmp.lt.f32.partialorder %v497, 1.0
        %v502 = vmul.f32 %v490, 0.5
        %v503 = vmul.f32 %v491, 0.5
        %v504 = vmul.f32 %v492, 0.5
        %v505 = vmul.f32 %v493, 0.5
        %v506 = vmul.f32 %v502, %v490
        %v507 = vmul.f32 %v503, %v491
        %v508 = vmul.f32 %v504, %v492
        %v509 = vmul.f32 %v505, %v493
        %v510 = vsub.f32 %v494, 0.5
        %v511 = vsub.f32 %v495, 0.5
        %v512 = vsub.f32 %v496, 0.5
        %v513 = vsub.f32 %v497, 0.5
        %v514 = vsel %vm498, %v506, %v510
        %v515 = vsel %vm499, %v507, %v511
        %v516 = vsel %vm500, %v508, %v512
        %v517 = vsel %vm501, %v509, %v513
        %v518 = vld [vmem:[%s432] sm:$0xff]
        %v519 = vld [vmem:[%s432 + $0x8] sm:$0xff]
        %v520 = vld [vmem:[%s432 + $0x10] sm:$0xff]
        %v521 = vld [vmem:[%s432 + $0x18] sm:$0xff]
        %v523 = vperm.slane %v478, 0
        %v524 = vperm.slane %v478, 1
        %v525 = vperm.slane %v478, 2
        %v526 = vperm.slane %v478, 3
        %v527 = vperm.slane %v478, 4
        %v528 = vperm.slane %v478, 5
        %v529 = vperm.slane %v478, 6
        %v530 = vperm.slane %v478, 7
        %v531 = vrot.slane %v524, 4
        %v532 = vrot.slane %v526, 4
        %v533 = vrot.slane %v528, 4
        %v534 = vrot.slane %v530, 4
        %vm535 = vcmask 1043456
        %v536 = vsel %vm535, %v523, %v531
        %v537 = vsel %vm535, %v525, %v532
        %v538 = vsel %vm535, %v527, %v533
        %v539 = vsel %vm535, %v529, %v534
        %v544 = vmul.f32 %v514, %v536
        %v545 = vmul.f32 %v515, %v537
        %v546 = vmul.f32 %v516, %v538
        %v547 = vmul.f32 %v517, %v539
        %v548 = vadd.f32 %v518, %v544
        %v549 = vadd.f32 %v519, %v545
        %v550 = vadd.f32 %v520, %v546
        %v551 = vadd.f32 %v521, %v547
        %552 = vst [vmem:[%s432] sm:$0xff] %v548
        %553 = vst [vmem:[%s432 + $0x8] sm:$0xff] %v549
        %554 = vst [vmem:[%s432 + $0x10] sm:$0xff] %v550
        %555 = vst [vmem:[%s432 + $0x18] sm:$0xff] %v551
        %v556 = vld [vmem:[%s350] sm:$0xff]
        %v557 = vld [vmem:[%s350 + $0x8] sm:$0xff]
        %v558 = vld [vmem:[%s350 + $0x10] sm:$0xff]
        %v559 = vld [vmem:[%s350 + $0x18] sm:$0xff]
        %v560 = vld [vmem:[%s350 + $0x20] sm:$0xff]
        %v561 = vld [vmem:[%s350 + $0x28] sm:$0xff]
        %v562 = vld [vmem:[%s350 + $0x30] sm:$0xff]
        %v563 = vld [vmem:[%s350 + $0x38] sm:$0xff]
        %v564 = vld [vmem:[%s350 + $0x40] sm:$0xff]
        %v565 = vld [vmem:[%s350 + $0x48] sm:$0xff]
        %v566 = vld [vmem:[%s350 + $0x50] sm:$0xff]
        %v567 = vld [vmem:[%s350 + $0x58] sm:$0xff]
        %v568 = vld [vmem:[%s350 + $0x60] sm:$0xff]
        %v569 = vld [vmem:[%s350 + $0x68] sm:$0xff]
        %v570 = vld [vmem:[%s350 + $0x70] sm:$0xff]
        %v571 = vld [vmem:[%s350 + $0x78] sm:$0xff]
        %v572 = vld [vmem:[%s350 + $0x80] sm:$0xf]
        %v573 = vld [vmem:[%s350 + $0x88] sm:$0xf]
        %v574 = vld [vmem:[%s350 + $0x90] sm:$0xf]
        %v575 = vld [vmem:[%s350 + $0x98] sm:$0xf]
        %v576 = vld [vmem:[%s350 + $0xa0] sm:$0xf]
        %v577 = vld [vmem:[%s350 + $0xa8] sm:$0xf]
        %v578 = vld [vmem:[%s350 + $0xb0] sm:$0xf]
        %v579 = vld [vmem:[%s350 + $0xb8] sm:$0xf]
        %v580 = vlaneseq
        %v581 = vshrl.u32 %v580, 7
        %v582 = vadd.s32 %v581, 8
        %v583 = vadd.s32 %v581, 16
        %v584 = vadd.s32 %v581, 1
        %v585 = vadd.s32 %v582, 1
        %v586 = vadd.s32 %v583, 1
        %v587 = vperm.slane %v475, 0
        %v588 = vperm.slane %v475, 1
        %v589 = vperm.slane %v475, 2
        %v590 = vperm.slane %v475, 3
        %v591 = vperm.slane %v475, 4
        %v592 = vperm.slane %v475, 5
        %v593 = vperm.slane %v475, 6
        %v594 = vperm.slane %v475, 7
        %vm595 = vcmp.eq.s32.totalorder %v587, %v584
        %vm596 = vcmp.eq.s32.totalorder %v588, %v584
        %vm597 = vcmp.eq.s32.totalorder %v589, %v584
        %vm598 = vcmp.eq.s32.totalorder %v590, %v584
        %vm599 = vcmp.eq.s32.totalorder %v591, %v584
        %vm600 = vcmp.eq.s32.totalorder %v592, %v584
        %vm601 = vcmp.eq.s32.totalorder %v593, %v584
        %vm602 = vcmp.eq.s32.totalorder %v594, %v584
        %vm603 = vcmp.eq.s32.totalorder %v587, %v585
        %vm604 = vcmp.eq.s32.totalorder %v588, %v585
        %vm605 = vcmp.eq.s32.totalorder %v589, %v585
        %vm606 = vcmp.eq.s32.totalorder %v590, %v585
        %vm607 = vcmp.eq.s32.totalorder %v591, %v585
        %vm608 = vcmp.eq.s32.totalorder %v592, %v585
        %vm609 = vcmp.eq.s32.totalorder %v593, %v585
        %vm610 = vcmp.eq.s32.totalorder %v594, %v585
        %vm611 = vcmp.eq.s32.totalorder %v587, %v586
        %vm612 = vcmp.eq.s32.totalorder %v588, %v586
        %vm613 = vcmp.eq.s32.totalorder %v589, %v586
        %vm614 = vcmp.eq.s32.totalorder %v590, %v586
        %vm615 = vcmp.eq.s32.totalorder %v591, %v586
        %vm616 = vcmp.eq.s32.totalorder %v592, %v586
        %vm617 = vcmp.eq.s32.totalorder %v593, %v586
        %vm618 = vcmp.eq.s32.totalorder %v594, %v586
        %v619 = vsel %vm595, 1, 0
        %v620 = vsel %vm596, 1, 0
        %v621 = vsel %vm597, 1, 0
        %v622 = vsel %vm598, 1, 0
        %v623 = vsel %vm599, 1, 0
        %v624 = vsel %vm600, 1, 0
        %v625 = vsel %vm601, 1, 0
        %v626 = vsel %vm602, 1, 0
        %v627 = vsel %vm603, 1, 0
        %v628 = vsel %vm604, 1, 0
        %v629 = vsel %vm605, 1, 0
        %v630 = vsel %vm606, 1, 0
        %v631 = vsel %vm607, 1, 0
        %v632 = vsel %vm608, 1, 0
        %v633 = vsel %vm609, 1, 0
        %v634 = vsel %vm610, 1, 0
        %v635 = vsel %vm611, 1, 0
        %v636 = vsel %vm612, 1, 0
        %v637 = vsel %vm613, 1, 0
        %v638 = vsel %vm614, 1, 0
        %v639 = vsel %vm615, 1, 0
        %v640 = vsel %vm616, 1, 0
        %v641 = vsel %vm617, 1, 0
        %v642 = vsel %vm618, 1, 0
        %v643 = vcvt.s32.f32 %v619
        %v644 = vcvt.s32.f32 %v620
        %v645 = vcvt.s32.f32 %v621
        %v646 = vcvt.s32.f32 %v622
        %v647 = vcvt.s32.f32 %v623
        %v648 = vcvt.s32.f32 %v624
        %v649 = vcvt.s32.f32 %v625
        %v650 = vcvt.s32.f32 %v626
        %v651 = vcvt.s32.f32 %v627
        %v652 = vcvt.s32.f32 %v628
        %v653 = vcvt.s32.f32 %v629
        %v654 = vcvt.s32.f32 %v630
        %v655 = vcvt.s32.f32 %v631
        %v656 = vcvt.s32.f32 %v632
        %v657 = vcvt.s32.f32 %v633
        %v658 = vcvt.s32.f32 %v634
        %v659 = vcvt.s32.f32 %v635
        %v660 = vcvt.s32.f32 %v636
        %v661 = vcvt.s32.f32 %v637
        %v662 = vcvt.s32.f32 %v638
        %v663 = vcvt.s32.f32 %v639
        %v664 = vcvt.s32.f32 %v640
        %v665 = vcvt.s32.f32 %v641
        %v666 = vcvt.s32.f32 %v642
        %v667 = vmul.f32 %v643, 2.0
        %v668 = vmul.f32 %v644, 2.0
        %v669 = vmul.f32 %v645, 2.0
        %v670 = vmul.f32 %v646, 2.0
        %v671 = vmul.f32 %v647, 2.0
        %v672 = vmul.f32 %v648, 2.0
        %v673 = vmul.f32 %v649, 2.0
        %v674 = vmul.f32 %v650, 2.0
        %v675 = vmul.f32 %v651, 2.0
        %v676 = vmul.f32 %v652, 2.0
        %v677 = vmul.f32 %v653, 2.0
        %v678 = vmul.f32 %v654, 2.0
        %v679 = vmul.f32 %v655, 2.0
        %v680 = vmul.f32 %v656, 2.0
        %v681 = vmul.f32 %v657, 2.0
        %v682 = vmul.f32 %v658, 2.0
        %v683 = vmul.f32 %v659, 2.0
        %v684 = vmul.f32 %v660, 2.0
        %v685 = vmul.f32 %v661, 2.0
        %v686 = vmul.f32 %v662, 2.0
        %v687 = vmul.f32 %v663, 2.0
        %v688 = vmul.f32 %v664, 2.0
        %v689 = vmul.f32 %v665, 2.0
        %v690 = vmul.f32 %v666, 2.0
        %v691 = vsub.f32 1.0, %v667
        %v692 = vsub.f32 1.0, %v668
        %v693 = vsub.f32 1.0, %v669
        %v694 = vsub.f32 1.0, %v670
        %v695 = vsub.f32 1.0, %v671
        %v696 = vsub.f32 1.0, %v672
        %v697 = vsub.f32 1.0, %v673
        %v698 = vsub.f32 1.0, %v674
        %v699 = vsub.f32 1.0, %v675
        %v700 = vsub.f32 1.0, %v676
        %v701 = vsub.f32 1.0, %v677
        %v702 = vsub.f32 1.0, %v678
        %v703 = vsub.f32 1.0, %v679
        %v704 = vsub.f32 1.0, %v680
        %v705 = vsub.f32 1.0, %v681
        %v706 = vsub.f32 1.0, %v682
        %v707 = vsub.f32 1.0, %v683
        %v708 = vsub.f32 1.0, %v684
        %v709 = vsub.f32 1.0, %v685
        %v710 = vsub.f32 1.0, %v686
        %v711 = vsub.f32 1.0, %v687
        %v712 = vsub.f32 1.0, %v688
        %v713 = vsub.f32 1.0, %v689
        %v714 = vsub.f32 1.0, %v690
        %v715 = vmul.f32 %v556, %v691
        %v716 = vmul.f32 %v557, %v692
        %v717 = vmul.f32 %v558, %v693
        %v718 = vmul.f32 %v559, %v694
        %v719 = vmul.f32 %v560, %v695
        %v720 = vmul.f32 %v561, %v696
        %v721 = vmul.f32 %v562, %v697
        %v722 = vmul.f32 %v563, %v698
        %v723 = vmul.f32 %v564, %v699
        %v724 = vmul.f32 %v565, %v700
        %v725 = vmul.f32 %v566, %v701
        %v726 = vmul.f32 %v567, %v702
        %v727 = vmul.f32 %v568, %v703
        %v728 = vmul.f32 %v569, %v704
        %v729 = vmul.f32 %v570, %v705
        %v730 = vmul.f32 %v571, %v706
        %v731 = vmul.f32 %v572, %v707
        %v732 = vmul.f32 %v573, %v708
        %v733 = vmul.f32 %v574, %v709
        %v734 = vmul.f32 %v575, %v710
        %v735 = vmul.f32 %v576, %v711
        %v736 = vmul.f32 %v577, %v712
        %v737 = vmul.f32 %v578, %v713
        %v738 = vmul.f32 %v579, %v714
        %v739 = vand.u32 2147483647, %v715
        %v740 = vand.u32 2147483647, %v716
        %v741 = vand.u32 2147483647, %v717
        %v742 = vand.u32 2147483647, %v718
        %v743 = vand.u32 2147483647, %v719
        %v744 = vand.u32 2147483647, %v720
        %v745 = vand.u32 2147483647, %v721
        %v746 = vand.u32 2147483647, %v722
        %v747 = vand.u32 2147483647, %v723
        %v748 = vand.u32 2147483647, %v724
        %v749 = vand.u32 2147483647, %v725
        %v750 = vand.u32 2147483647, %v726
        %v751 = vand.u32 2147483647, %v727
        %v752 = vand.u32 2147483647, %v728
        %v753 = vand.u32 2147483647, %v729
        %v754 = vand.u32 2147483647, %v730
        %v755 = vand.u32 2147483647, %v731
        %v756 = vand.u32 2147483647, %v732
        %v757 = vand.u32 2147483647, %v733
        %v758 = vand.u32 2147483647, %v734
        %v759 = vand.u32 2147483647, %v735
        %v760 = vand.u32 2147483647, %v736
        %v761 = vand.u32 2147483647, %v737
        %v762 = vand.u32 2147483647, %v738
        %v763 = vsub.f32 0.0, %v739
        %v764 = vsub.f32 0.0, %v740
        %v765 = vsub.f32 0.0, %v741
        %v766 = vsub.f32 0.0, %v742
        %v767 = vsub.f32 0.0, %v743
        %v768 = vsub.f32 0.0, %v744
        %v769 = vsub.f32 0.0, %v745
        %v770 = vsub.f32 0.0, %v746
        %v771 = vsub.f32 0.0, %v747
        %v772 = vsub.f32 0.0, %v748
        %v773 = vsub.f32 0.0, %v749
        %v774 = vsub.f32 0.0, %v750
        %v775 = vsub.f32 0.0, %v751
        %v776 = vsub.f32 0.0, %v752
        %v777 = vsub.f32 0.0, %v753
        %v778 = vsub.f32 0.0, %v754
        %v779 = vsub.f32 0.0, %v755
        %v780 = vsub.f32 0.0, %v756
        %v781 = vsub.f32 0.0, %v757
        %v782 = vsub.f32 0.0, %v758
        %v783 = vsub.f32 0.0, %v759
        %v784 = vsub.f32 0.0, %v760
        %v785 = vsub.f32 0.0, %v761
        %v786 = vsub.f32 0.0, %v762
        %v787 = vmul.f32 %v763, 1.442695
        %v788 = vpow.pop %v787
        %v789 = vmul.f32 %v764, 1.442695
        %v790 = vpow.pop %v789
        %v791 = vmul.f32 %v765, 1.442695
        %v792 = vpow.pop %v791
        %v793 = vmul.f32 %v766, 1.442695
        %v794 = vpow.pop %v793
        %v795 = vmul.f32 %v767, 1.442695
        %v796 = vpow.pop %v795
        %v797 = vmul.f32 %v768, 1.442695
        %v798 = vpow.pop %v797
        %v799 = vmul.f32 %v769, 1.442695
        %v800 = vpow.pop %v799
        %v801 = vmul.f32 %v770, 1.442695
        %v802 = vpow.pop %v801
        %v803 = vmul.f32 %v771, 1.442695
        %v804 = vpow.pop %v803
        %v805 = vmul.f32 %v772, 1.442695
        %v806 = vpow.pop %v805
        %v807 = vmul.f32 %v773, 1.442695
        %v808 = vpow.pop %v807
        %v809 = vmul.f32 %v774, 1.442695
        %v810 = vpow.pop %v809
        %v811 = vmul.f32 %v775, 1.442695
        %v812 = vpow.pop %v811
        %v813 = vmul.f32 %v776, 1.442695
        %v814 = vpow.pop %v813
        %v815 = vmul.f32 %v777, 1.442695
        %v816 = vpow.pop %v815
        %v817 = vmul.f32 %v778, 1.442695
        %v818 = vpow.pop %v817
        %v819 = vmul.f32 %v779, 1.442695
        %v820 = vpow.pop %v819
        %v821 = vmul.f32 %v780, 1.442695
        %v822 = vpow.pop %v821
        %v823 = vmul.f32 %v781, 1.442695
        %v824 = vpow.pop %v823
        %v825 = vmul.f32 %v782, 1.442695
        %v826 = vpow.pop %v825
        %v827 = vmul.f32 %v783, 1.442695
        %v828 = vpow.pop %v827
        %v829 = vmul.f32 %v784, 1.442695
        %v830 = vpow.pop %v829
        %v831 = vmul.f32 %v785, 1.442695
        %v832 = vpow.pop %v831
        %v833 = vmul.f32 %v786, 1.442695
        %v834 = vpow.pop %v833
        %v835 = vadd.f32 %v788, 1.0
        %v836 = vadd.f32 %v790, 1.0
        %v837 = vadd.f32 %v792, 1.0
        %v838 = vadd.f32 %v794, 1.0
        %v839 = vadd.f32 %v796, 1.0
        %v840 = vadd.f32 %v798, 1.0
        %v841 = vadd.f32 %v800, 1.0
        %v842 = vadd.f32 %v802, 1.0
        %v843 = vadd.f32 %v804, 1.0
        %v844 = vadd.f32 %v806, 1.0
        %v845 = vadd.f32 %v808, 1.0
        %v846 = vadd.f32 %v810, 1.0
        %v847 = vadd.f32 %v812, 1.0
        %v848 = vadd.f32 %v814, 1.0
        %v849 = vadd.f32 %v816, 1.0
        %v850 = vadd.f32 %v818, 1.0
        %v851 = vadd.f32 %v820, 1.0
        %v852 = vadd.f32 %v822, 1.0
        %v853 = vadd.f32 %v824, 1.0
        %v854 = vadd.f32 %v826, 1.0
        %v855 = vadd.f32 %v828, 1.0
        %v856 = vadd.f32 %v830, 1.0
        %v857 = vadd.f32 %v832, 1.0
        %v858 = vadd.f32 %v834, 1.0
        %v859 = vrcp.pop %v835
        %v860 = vrcp.pop %v836
        %v861 = vrcp.pop %v837
        %v862 = vrcp.pop %v838
        %v863 = vrcp.pop %v839
        %v864 = vrcp.pop %v840
        %v865 = vrcp.pop %v841
        %v866 = vrcp.pop %v842
        %v867 = vrcp.pop %v843
        %v868 = vrcp.pop %v844
        %v869 = vrcp.pop %v845
        %v870 = vrcp.pop %v846
        %v871 = vrcp.pop %v847
        %v872 = vrcp.pop %v848
        %v873 = vrcp.pop %v849
        %v874 = vrcp.pop %v850
        %v875 = vrcp.pop %v851
        %v876 = vrcp.pop %v852
        %v877 = vrcp.pop %v853
        %v878 = vrcp.pop %v854
        %v879 = vrcp.pop %v855
        %v880 = vrcp.pop %v856
        %v881 = vrcp.pop %v857
        %v882 = vrcp.pop %v858
        %vm883 = vcmp.gt.f32.partialorder %v715, 0.0
        %vm884 = vcmp.gt.f32.partialorder %v716, 0.0
        %vm885 = vcmp.gt.f32.partialorder %v717, 0.0
        %vm886 = vcmp.gt.f32.partialorder %v718, 0.0
        %vm887 = vcmp.gt.f32.partialorder %v719, 0.0
        %vm888 = vcmp.gt.f32.partialorder %v720, 0.0
        %vm889 = vcmp.gt.f32.partialorder %v721, 0.0
        %vm890 = vcmp.gt.f32.partialorder %v722, 0.0
        %vm891 = vcmp.gt.f32.partialorder %v723, 0.0
        %vm892 = vcmp.gt.f32.partialorder %v724, 0.0
        %vm893 = vcmp.gt.f32.partialorder %v725, 0.0
        %vm894 = vcmp.gt.f32.partialorder %v726, 0.0
        %vm895 = vcmp.gt.f32.partialorder %v727, 0.0
        %vm896 = vcmp.gt.f32.partialorder %v728, 0.0
        %vm897 = vcmp.gt.f32.partialorder %v729, 0.0
        %vm898 = vcmp.gt.f32.partialorder %v730, 0.0
        %vm899 = vcmp.gt.f32.partialorder %v731, 0.0
        %vm900 = vcmp.gt.f32.partialorder %v732, 0.0
        %vm901 = vcmp.gt.f32.partialorder %v733, 0.0
        %vm902 = vcmp.gt.f32.partialorder %v734, 0.0
        %vm903 = vcmp.gt.f32.partialorder %v735, 0.0
        %vm904 = vcmp.gt.f32.partialorder %v736, 0.0
        %vm905 = vcmp.gt.f32.partialorder %v737, 0.0
        %vm906 = vcmp.gt.f32.partialorder %v738, 0.0
        %v907 = vsel %vm883, %v788, 1.0
        %v908 = vsel %vm884, %v790, 1.0
        %v909 = vsel %vm885, %v792, 1.0
        %v910 = vsel %vm886, %v794, 1.0
        %v911 = vsel %vm887, %v796, 1.0
        %v912 = vsel %vm888, %v798, 1.0
        %v913 = vsel %vm889, %v800, 1.0
        %v914 = vsel %vm890, %v802, 1.0
        %v915 = vsel %vm891, %v804, 1.0
        %v916 = vsel %vm892, %v806, 1.0
        %v917 = vsel %vm893, %v808, 1.0
        %v918 = vsel %vm894, %v810, 1.0
        %v919 = vsel %vm895, %v812, 1.0
        %v920 = vsel %vm896, %v814, 1.0
        %v921 = vsel %vm897, %v816, 1.0
        %v922 = vsel %vm898, %v818, 1.0
        %v923 = vsel %vm899, %v820, 1.0
        %v924 = vsel %vm900, %v822, 1.0
        %v925 = vsel %vm901, %v824, 1.0
        %v926 = vsel %vm902, %v826, 1.0
        %v927 = vsel %vm903, %v828, 1.0
        %v928 = vsel %vm904, %v830, 1.0
        %v929 = vsel %vm905, %v832, 1.0
        %v930 = vsel %vm906, %v834, 1.0
        %v931 = vmul.f32 %v907, %v859
        %v932 = vmul.f32 %v908, %v860
        %v933 = vmul.f32 %v909, %v861
        %v934 = vmul.f32 %v910, %v862
        %v935 = vmul.f32 %v911, %v863
        %v936 = vmul.f32 %v912, %v864
        %v937 = vmul.f32 %v913, %v865
        %v938 = vmul.f32 %v914, %v866
        %v939 = vmul.f32 %v915, %v867
        %v940 = vmul.f32 %v916, %v868
        %v941 = vmul.f32 %v917, %v869
        %v942 = vmul.f32 %v918, %v870
        %v943 = vmul.f32 %v919, %v871
        %v944 = vmul.f32 %v920, %v872
        %v945 = vmul.f32 %v921, %v873
        %v946 = vmul.f32 %v922, %v874
        %v947 = vmul.f32 %v923, %v875
        %v948 = vmul.f32 %v924, %v876
        %v949 = vmul.f32 %v925, %v877
        %v950 = vmul.f32 %v926, %v878
        %v951 = vmul.f32 %v927, %v879
        %v952 = vmul.f32 %v928, %v880
        %v953 = vmul.f32 %v929, %v881
        %v954 = vmul.f32 %v930, %v882
        %v955 = vsub.f32 1.0, %v931
        %v956 = vsub.f32 1.0, %v932
        %v957 = vsub.f32 1.0, %v933
        %v958 = vsub.f32 1.0, %v934
        %v959 = vsub.f32 1.0, %v935
        %v960 = vsub.f32 1.0, %v936
        %v961 = vsub.f32 1.0, %v937
        %v962 = vsub.f32 1.0, %v938
        %v963 = vsub.f32 1.0, %v939
        %v964 = vsub.f32 1.0, %v940
        %v965 = vsub.f32 1.0, %v941
        %v966 = vsub.f32 1.0, %v942
        %v967 = vsub.f32 1.0, %v943
        %v968 = vsub.f32 1.0, %v944
        %v969 = vsub.f32 1.0, %v945
        %v970 = vsub.f32 1.0, %v946
        %v971 = vsub.f32 1.0, %v947
        %v972 = vsub.f32 1.0, %v948
        %v973 = vsub.f32 1.0, %v949
        %v974 = vsub.f32 1.0, %v950
        %v975 = vsub.f32 1.0, %v951
        %v976 = vsub.f32 1.0, %v952
        %v977 = vsub.f32 1.0, %v953
        %v978 = vsub.f32 1.0, %v954
        %v979 = vmul.f32 %v643, -0.5
        %v980 = vmul.f32 %v644, -0.5
        %v981 = vmul.f32 %v645, -0.5
        %v982 = vmul.f32 %v646, -0.5
        %v983 = vmul.f32 %v647, -0.5
        %v984 = vmul.f32 %v648, -0.5
        %v985 = vmul.f32 %v649, -0.5
        %v986 = vmul.f32 %v650, -0.5
        %v987 = vmul.f32 %v651, -0.5
        %v988 = vmul.f32 %v652, -0.5
        %v989 = vmul.f32 %v653, -0.5
        %v990 = vmul.f32 %v654, -0.5
        %v991 = vmul.f32 %v655, -0.5
        %v992 = vmul.f32 %v656, -0.5
        %v993 = vmul.f32 %v657, -0.5
        %v994 = vmul.f32 %v658, -0.5
        %v995 = vmul.f32 %v659, -0.5
        %v996 = vmul.f32 %v660, -0.5
        %v997 = vmul.f32 %v661, -0.5
        %v998 = vmul.f32 %v662, -0.5
        %v999 = vmul.f32 %v663, -0.5
        %v1000 = vmul.f32 %v664, -0.5
        %v1001 = vmul.f32 %v665, -0.5
        %v1002 = vmul.f32 %v666, -0.5
        %v1003 = vadd.f32 %v979, 0.75
        %v1004 = vadd.f32 %v980, 0.75
        %v1005 = vadd.f32 %v981, 0.75
        %v1006 = vadd.f32 %v982, 0.75
        %v1007 = vadd.f32 %v983, 0.75
        %v1008 = vadd.f32 %v984, 0.75
        %v1009 = vadd.f32 %v985, 0.75
        %v1010 = vadd.f32 %v986, 0.75
        %v1011 = vadd.f32 %v987, 0.75
        %v1012 = vadd.f32 %v988, 0.75
        %v1013 = vadd.f32 %v989, 0.75
        %v1014 = vadd.f32 %v990, 0.75
        %v1015 = vadd.f32 %v991, 0.75
        %v1016 = vadd.f32 %v992, 0.75
        %v1017 = vadd.f32 %v993, 0.75
        %v1018 = vadd.f32 %v994, 0.75
        %v1019 = vadd.f32 %v995, 0.75
        %v1020 = vadd.f32 %v996, 0.75
        %v1021 = vadd.f32 %v997, 0.75
        %v1022 = vadd.f32 %v998, 0.75
        %v1023 = vadd.f32 %v999, 0.75
        %v1024 = vadd.f32 %v1000, 0.75
        %v1025 = vadd.f32 %v1001, 0.75
        %v1026 = vadd.f32 %v1002, 0.75
        %v1027 = vmul.f32 %v955, %v955
        %v1028 = vmul.f32 %v956, %v956
        %v1029 = vmul.f32 %v957, %v957
        %v1030 = vmul.f32 %v958, %v958
        %v1031 = vmul.f32 %v959, %v959
        %v1032 = vmul.f32 %v960, %v960
        %v1033 = vmul.f32 %v961, %v961
        %v1034 = vmul.f32 %v962, %v962
        %v1035 = vmul.f32 %v963, %v963
        %v1036 = vmul.f32 %v964, %v964
        %v1037 = vmul.f32 %v965, %v965
        %v1038 = vmul.f32 %v966, %v966
        %v1039 = vmul.f32 %v967, %v967
        %v1040 = vmul.f32 %v968, %v968
        %v1041 = vmul.f32 %v969, %v969
        %v1042 = vmul.f32 %v970, %v970
        %v1043 = vmul.f32 %v971, %v971
        %v1044 = vmul.f32 %v972, %v972
        %v1045 = vmul.f32 %v973, %v973
        %v1046 = vmul.f32 %v974, %v974
        %v1047 = vmul.f32 %v975, %v975
        %v1048 = vmul.f32 %v976, %v976
        %v1049 = vmul.f32 %v977, %v977
        %v1050 = vmul.f32 %v978, %v978
        %v1051 = vmul.f32 %v1003, %v1027
        %v1052 = vmul.f32 %v1004, %v1028
        %v1053 = vmul.f32 %v1005, %v1029
        %v1054 = vmul.f32 %v1006, %v1030
        %v1055 = vmul.f32 %v1007, %v1031
        %v1056 = vmul.f32 %v1008, %v1032
        %v1057 = vmul.f32 %v1009, %v1033
        %v1058 = vmul.f32 %v1010, %v1034
        %v1059 = vmul.f32 %v1011, %v1035
        %v1060 = vmul.f32 %v1012, %v1036
        %v1061 = vmul.f32 %v1013, %v1037
        %v1062 = vmul.f32 %v1014, %v1038
        %v1063 = vmul.f32 %v1015, %v1039
        %v1064 = vmul.f32 %v1016, %v1040
        %v1065 = vmul.f32 %v1017, %v1041
        %v1066 = vmul.f32 %v1018, %v1042
        %v1067 = vmul.f32 %v1019, %v1043
        %v1068 = vmul.f32 %v1020, %v1044
        %v1069 = vmul.f32 %v1021, %v1045
        %v1070 = vmul.f32 %v1022, %v1046
        %v1071 = vmul.f32 %v1023, %v1047
        %v1072 = vmul.f32 %v1024, %v1048
        %v1073 = vmul.f32 %v1025, %v1049
        %v1074 = vmul.f32 %v1026, %v1050
        %v1075 = vmax.f32 %v715, 0.0
        %v1076 = vmax.f32 %v716, 0.0
        %v1077 = vmax.f32 %v717, 0.0
        %v1078 = vmax.f32 %v718, 0.0
        %v1079 = vmax.f32 %v719, 0.0
        %v1080 = vmax.f32 %v720, 0.0
        %v1081 = vmax.f32 %v721, 0.0
        %v1082 = vmax.f32 %v722, 0.0
        %v1083 = vmax.f32 %v723, 0.0
        %v1084 = vmax.f32 %v724, 0.0
        %v1085 = vmax.f32 %v725, 0.0
        %v1086 = vmax.f32 %v726, 0.0
        %v1087 = vmax.f32 %v727, 0.0
        %v1088 = vmax.f32 %v728, 0.0
        %v1089 = vmax.f32 %v729, 0.0
        %v1090 = vmax.f32 %v730, 0.0
        %v1091 = vmax.f32 %v731, 0.0
        %v1092 = vmax.f32 %v732, 0.0
        %v1093 = vmax.f32 %v733, 0.0
        %v1094 = vmax.f32 %v734, 0.0
        %v1095 = vmax.f32 %v735, 0.0
        %v1096 = vmax.f32 %v736, 0.0
        %v1097 = vmax.f32 %v737, 0.0
        %v1098 = vmax.f32 %v738, 0.0
        %v1099 = vadd.f32 %v788, 1.0
        %v1100 = vlog2.pop %v1099
        %v1101 = vmul.f32 %v1100, 0.6931472
        %v1102 = vmul.f32 -0.5, %v788
        %v1103 = vadd.f32 %v1102, 1.0
        %v1104 = vmul.f32 %v1103, %v788
        %v1105 = vand.u32 2147483647, %v788
        %vm1106 = vcmp.lt.f32.partialorder %v1105, 0.0004427343
        %v1107 = vsel %vm1106, %v1104, %v1101
        %v1108 = vadd.f32 %v790, 1.0
        %v1109 = vlog2.pop %v1108
        %v1110 = vmul.f32 %v1109, 0.6931472
        %v1111 = vmul.f32 -0.5, %v790
        %v1112 = vadd.f32 %v1111, 1.0
        %v1113 = vmul.f32 %v1112, %v790
        %v1114 = vand.u32 2147483647, %v790
        %vm1115 = vcmp.lt.f32.partialorder %v1114, 0.0004427343
        %v1116 = vsel %vm1115, %v1113, %v1110
        %v1117 = vadd.f32 %v792, 1.0
        %v1118 = vlog2.pop %v1117
        %v1119 = vmul.f32 %v1118, 0.6931472
        %v1120 = vmul.f32 -0.5, %v792
        %v1121 = vadd.f32 %v1120, 1.0
        %v1122 = vmul.f32 %v1121, %v792
        %v1123 = vand.u32 2147483647, %v792
        %vm1124 = vcmp.lt.f32.partialorder %v1123, 0.0004427343
        %v1125 = vsel %vm1124, %v1122, %v1119
        %v1126 = vadd.f32 %v794, 1.0
        %v1127 = vlog2.pop %v1126
        %v1128 = vmul.f32 %v1127, 0.6931472
        %v1129 = vmul.f32 -0.5, %v794
        %v1130 = vadd.f32 %v1129, 1.0
        %v1131 = vmul.f32 %v1130, %v794
        %v1132 = vand.u32 2147483647, %v794
        %vm1133 = vcmp.lt.f32.partialorder %v1132, 0.0004427343
        %v1134 = vsel %vm1133, %v1131, %v1128
        %v1135 = vadd.f32 %v796, 1.0
        %v1136 = vlog2.pop %v1135
        %v1137 = vmul.f32 %v1136, 0.6931472
        %v1138 = vmul.f32 -0.5, %v796
        %v1139 = vadd.f32 %v1138, 1.0
        %v1140 = vmul.f32 %v1139, %v796
        %v1141 = vand.u32 2147483647, %v796
        %vm1142 = vcmp.lt.f32.partialorder %v1141, 0.0004427343
        %v1143 = vsel %vm1142, %v1140, %v1137
        %v1144 = vadd.f32 %v798, 1.0
        %v1145 = vlog2.pop %v1144
        %v1146 = vmul.f32 %v1145, 0.6931472
        %v1147 = vmul.f32 -0.5, %v798
        %v1148 = vadd.f32 %v1147, 1.0
        %v1149 = vmul.f32 %v1148, %v798
        %v1150 = vand.u32 2147483647, %v798
        %vm1151 = vcmp.lt.f32.partialorder %v1150, 0.0004427343
        %v1152 = vsel %vm1151, %v1149, %v1146
        %v1153 = vadd.f32 %v800, 1.0
        %v1154 = vlog2.pop %v1153
        %v1155 = vmul.f32 %v1154, 0.6931472
        %v1156 = vmul.f32 -0.5, %v800
        %v1157 = vadd.f32 %v1156, 1.0
        %v1158 = vmul.f32 %v1157, %v800
        %v1159 = vand.u32 2147483647, %v800
        %vm1160 = vcmp.lt.f32.partialorder %v1159, 0.0004427343
        %v1161 = vsel %vm1160, %v1158, %v1155
        %v1162 = vadd.f32 %v802, 1.0
        %v1163 = vlog2.pop %v1162
        %v1164 = vmul.f32 %v1163, 0.6931472
        %v1165 = vmul.f32 -0.5, %v802
        %v1166 = vadd.f32 %v1165, 1.0
        %v1167 = vmul.f32 %v1166, %v802
        %v1168 = vand.u32 2147483647, %v802
        %vm1169 = vcmp.lt.f32.partialorder %v1168, 0.0004427343
        %v1170 = vsel %vm1169, %v1167, %v1164
        %v1171 = vadd.f32 %v804, 1.0
        %v1172 = vlog2.pop %v1171
        %v1173 = vmul.f32 %v1172, 0.6931472
        %v1174 = vmul.f32 -0.5, %v804
        %v1175 = vadd.f32 %v1174, 1.0
        %v1176 = vmul.f32 %v1175, %v804
        %v1177 = vand.u32 2147483647, %v804
        %vm1178 = vcmp.lt.f32.partialorder %v1177, 0.0004427343
        %v1179 = vsel %vm1178, %v1176, %v1173
        %v1180 = vadd.f32 %v806, 1.0
        %v1181 = vlog2.pop %v1180
        %v1182 = vmul.f32 %v1181, 0.6931472
        %v1183 = vmul.f32 -0.5, %v806
        %v1184 = vadd.f32 %v1183, 1.0
        %v1185 = vmul.f32 %v1184, %v806
        %v1186 = vand.u32 2147483647, %v806
        %vm1187 = vcmp.lt.f32.partialorder %v1186, 0.0004427343
        %v1188 = vsel %vm1187, %v1185, %v1182
        %v1189 = vadd.f32 %v808, 1.0
        %v1190 = vlog2.pop %v1189
        %v1191 = vmul.f32 %v1190, 0.6931472
        %v1192 = vmul.f32 -0.5, %v808
        %v1193 = vadd.f32 %v1192, 1.0
        %v1194 = vmul.f32 %v1193, %v808
        %v1195 = vand.u32 2147483647, %v808
        %vm1196 = vcmp.lt.f32.partialorder %v1195, 0.0004427343
        %v1197 = vsel %vm1196, %v1194, %v1191
        %v1198 = vadd.f32 %v810, 1.0
        %v1199 = vlog2.pop %v1198
        %v1200 = vmul.f32 %v1199, 0.6931472
        %v1201 = vmul.f32 -0.5, %v810
        %v1202 = vadd.f32 %v1201, 1.0
        %v1203 = vmul.f32 %v1202, %v810
        %v1204 = vand.u32 2147483647, %v810
        %vm1205 = vcmp.lt.f32.partialorder %v1204, 0.0004427343
        %v1206 = vsel %vm1205, %v1203, %v1200
        %v1207 = vadd.f32 %v812, 1.0
        %v1208 = vlog2.pop %v1207
        %v1209 = vmul.f32 %v1208, 0.6931472
        %v1210 = vmul.f32 -0.5, %v812
        %v1211 = vadd.f32 %v1210, 1.0
        %v1212 = vmul.f32 %v1211, %v812
        %v1213 = vand.u32 2147483647, %v812
        %vm1214 = vcmp.lt.f32.partialorder %v1213, 0.0004427343
        %v1215 = vsel %vm1214, %v1212, %v1209
        %v1216 = vadd.f32 %v814, 1.0
        %v1217 = vlog2.pop %v1216
        %v1218 = vmul.f32 %v1217, 0.6931472
        %v1219 = vmul.f32 -0.5, %v814
        %v1220 = vadd.f32 %v1219, 1.0
        %v1221 = vmul.f32 %v1220, %v814
        %v1222 = vand.u32 2147483647, %v814
        %vm1223 = vcmp.lt.f32.partialorder %v1222, 0.0004427343
        %v1224 = vsel %vm1223, %v1221, %v1218
        %v1225 = vadd.f32 %v816, 1.0
        %v1226 = vlog2.pop %v1225
        %v1227 = vmul.f32 %v1226, 0.6931472
        %v1228 = vmul.f32 -0.5, %v816
        %v1229 = vadd.f32 %v1228, 1.0
        %v1230 = vmul.f32 %v1229, %v816
        %v1231 = vand.u32 2147483647, %v816
        %vm1232 = vcmp.lt.f32.partialorder %v1231, 0.0004427343
        %v1233 = vsel %vm1232, %v1230, %v1227
        %v1234 = vadd.f32 %v818, 1.0
        %v1235 = vlog2.pop %v1234
        %v1236 = vmul.f32 %v1235, 0.6931472
        %v1237 = vmul.f32 -0.5, %v818
        %v1238 = vadd.f32 %v1237, 1.0
        %v1239 = vmul.f32 %v1238, %v818
        %v1240 = vand.u32 2147483647, %v818
        %vm1241 = vcmp.lt.f32.partialorder %v1240, 0.0004427343
        %v1242 = vsel %vm1241, %v1239, %v1236
        %v1243 = vadd.f32 %v820, 1.0
        %v1244 = vlog2.pop %v1243
        %v1245 = vmul.f32 %v1244, 0.6931472
        %v1246 = vmul.f32 -0.5, %v820
        %v1247 = vadd.f32 %v1246, 1.0
        %v1248 = vmul.f32 %v1247, %v820
        %v1249 = vand.u32 2147483647, %v820
        %vm1250 = vcmp.lt.f32.partialorder %v1249, 0.0004427343
        %v1251 = vsel %vm1250, %v1248, %v1245
        %v1252 = vadd.f32 %v822, 1.0
        %v1253 = vlog2.pop %v1252
        %v1254 = vmul.f32 %v1253, 0.6931472
        %v1255 = vmul.f32 -0.5, %v822
        %v1256 = vadd.f32 %v1255, 1.0
        %v1257 = vmul.f32 %v1256, %v822
        %v1258 = vand.u32 2147483647, %v822
        %vm1259 = vcmp.lt.f32.partialorder %v1258, 0.0004427343
        %v1260 = vsel %vm1259, %v1257, %v1254
        %v1261 = vadd.f32 %v824, 1.0
        %v1262 = vlog2.pop %v1261
        %v1263 = vmul.f32 %v1262, 0.6931472
        %v1264 = vmul.f32 -0.5, %v824
        %v1265 = vadd.f32 %v1264, 1.0
        %v1266 = vmul.f32 %v1265, %v824
        %v1267 = vand.u32 2147483647, %v824
        %vm1268 = vcmp.lt.f32.partialorder %v1267, 0.0004427343
        %v1269 = vsel %vm1268, %v1266, %v1263
        %v1270 = vadd.f32 %v826, 1.0
        %v1271 = vlog2.pop %v1270
        %v1272 = vmul.f32 %v1271, 0.6931472
        %v1273 = vmul.f32 -0.5, %v826
        %v1274 = vadd.f32 %v1273, 1.0
        %v1275 = vmul.f32 %v1274, %v826
        %v1276 = vand.u32 2147483647, %v826
        %vm1277 = vcmp.lt.f32.partialorder %v1276, 0.0004427343
        %v1278 = vsel %vm1277, %v1275, %v1272
        %v1279 = vadd.f32 %v828, 1.0
        %v1280 = vlog2.pop %v1279
        %v1281 = vmul.f32 %v1280, 0.6931472
        %v1282 = vmul.f32 -0.5, %v828
        %v1283 = vadd.f32 %v1282, 1.0
        %v1284 = vmul.f32 %v1283, %v828
        %v1285 = vand.u32 2147483647, %v828
        %vm1286 = vcmp.lt.f32.partialorder %v1285, 0.0004427343
        %v1287 = vsel %vm1286, %v1284, %v1281
        %v1288 = vadd.f32 %v830, 1.0
        %v1289 = vlog2.pop %v1288
        %v1290 = vmul.f32 %v1289, 0.6931472
        %v1291 = vmul.f32 -0.5, %v830
        %v1292 = vadd.f32 %v1291, 1.0
        %v1293 = vmul.f32 %v1292, %v830
        %v1294 = vand.u32 2147483647, %v830
        %vm1295 = vcmp.lt.f32.partialorder %v1294, 0.0004427343
        %v1296 = vsel %vm1295, %v1293, %v1290
        %v1297 = vadd.f32 %v832, 1.0
        %v1298 = vlog2.pop %v1297
        %v1299 = vmul.f32 %v1298, 0.6931472
        %v1300 = vmul.f32 -0.5, %v832
        %v1301 = vadd.f32 %v1300, 1.0
        %v1302 = vmul.f32 %v1301, %v832
        %v1303 = vand.u32 2147483647, %v832
        %vm1304 = vcmp.lt.f32.partialorder %v1303, 0.0004427343
        %v1305 = vsel %vm1304, %v1302, %v1299
        %v1306 = vadd.f32 %v834, 1.0
        %v1307 = vlog2.pop %v1306
        %v1308 = vmul.f32 %v1307, 0.6931472
        %v1309 = vmul.f32 -0.5, %v834
        %v1310 = vadd.f32 %v1309, 1.0
        %v1311 = vmul.f32 %v1310, %v834
        %v1312 = vand.u32 2147483647, %v834
        %vm1313 = vcmp.lt.f32.partialorder %v1312, 0.0004427343
        %v1314 = vsel %vm1313, %v1311, %v1308
        %v1315 = vadd.f32 %v1075, %v1107
        %v1316 = vadd.f32 %v1076, %v1116
        %v1317 = vadd.f32 %v1077, %v1125
        %v1318 = vadd.f32 %v1078, %v1134
        %v1319 = vadd.f32 %v1079, %v1143
        %v1320 = vadd.f32 %v1080, %v1152
        %v1321 = vadd.f32 %v1081, %v1161
        %v1322 = vadd.f32 %v1082, %v1170
        %v1323 = vadd.f32 %v1083, %v1179
        %v1324 = vadd.f32 %v1084, %v1188
        %v1325 = vadd.f32 %v1085, %v1197
        %v1326 = vadd.f32 %v1086, %v1206
        %v1327 = vadd.f32 %v1087, %v1215
        %v1328 = vadd.f32 %v1088, %v1224
        %v1329 = vadd.f32 %v1089, %v1233
        %v1330 = vadd.f32 %v1090, %v1242
        %v1331 = vadd.f32 %v1091, %v1251
        %v1332 = vadd.f32 %v1092, %v1260
        %v1333 = vadd.f32 %v1093, %v1269
        %v1334 = vadd.f32 %v1094, %v1278
        %v1335 = vadd.f32 %v1095, %v1287
        %v1336 = vadd.f32 %v1096, %v1296
        %v1337 = vadd.f32 %v1097, %v1305
        %v1338 = vadd.f32 %v1098, %v1314
        %v1339 = vld [vmem:[%s437] sm:$0xff]
        %v1340 = vld [vmem:[%s437 + $0x8] sm:$0xff]
        %v1341 = vld [vmem:[%s437 + $0x10] sm:$0xff]
        %v1342 = vld [vmem:[%s437 + $0x18] sm:$0xff]
        %v1343 = vld [vmem:[%s437 + $0x20] sm:$0xff]
        %v1344 = vld [vmem:[%s437 + $0x28] sm:$0xff]
        %v1345 = vld [vmem:[%s437 + $0x30] sm:$0xff]
        %v1346 = vld [vmem:[%s437 + $0x38] sm:$0xff]
        %v1347 = vld [vmem:[%s437 + $0x40] sm:$0xff]
        %v1348 = vld [vmem:[%s437 + $0x48] sm:$0xff]
        %v1349 = vld [vmem:[%s437 + $0x50] sm:$0xff]
        %v1350 = vld [vmem:[%s437 + $0x58] sm:$0xff]
        %v1351 = vld [vmem:[%s437 + $0x60] sm:$0xff]
        %v1352 = vld [vmem:[%s437 + $0x68] sm:$0xff]
        %v1353 = vld [vmem:[%s437 + $0x70] sm:$0xff]
        %v1354 = vld [vmem:[%s437 + $0x78] sm:$0xff]
        %v1355 = vld [vmem:[%s437 + $0x80] sm:$0xf]
        %v1356 = vld [vmem:[%s437 + $0x88] sm:$0xf]
        %v1357 = vld [vmem:[%s437 + $0x90] sm:$0xf]
        %v1358 = vld [vmem:[%s437 + $0x98] sm:$0xf]
        %v1359 = vld [vmem:[%s437 + $0xa0] sm:$0xf]
        %v1360 = vld [vmem:[%s437 + $0xa8] sm:$0xf]
        %v1361 = vld [vmem:[%s437 + $0xb0] sm:$0xf]
        %v1362 = vld [vmem:[%s437 + $0xb8] sm:$0xf]
        %v1363 = vmul.f32 %v1051, %v1315
        %v1364 = vmul.f32 %v1052, %v1316
        %v1365 = vmul.f32 %v1053, %v1317
        %v1366 = vmul.f32 %v1054, %v1318
        %v1367 = vmul.f32 %v1055, %v1319
        %v1368 = vmul.f32 %v1056, %v1320
        %v1369 = vmul.f32 %v1057, %v1321
        %v1370 = vmul.f32 %v1058, %v1322
        %v1371 = vmul.f32 %v1059, %v1323
        %v1372 = vmul.f32 %v1060, %v1324
        %v1373 = vmul.f32 %v1061, %v1325
        %v1374 = vmul.f32 %v1062, %v1326
        %v1375 = vmul.f32 %v1063, %v1327
        %v1376 = vmul.f32 %v1064, %v1328
        %v1377 = vmul.f32 %v1065, %v1329
        %v1378 = vmul.f32 %v1066, %v1330
        %v1379 = vmul.f32 %v1067, %v1331
        %v1380 = vmul.f32 %v1068, %v1332
        %v1381 = vmul.f32 %v1069, %v1333
        %v1382 = vmul.f32 %v1070, %v1334
        %v1383 = vmul.f32 %v1071, %v1335
        %v1384 = vmul.f32 %v1072, %v1336
        %v1385 = vmul.f32 %v1073, %v1337
        %v1386 = vmul.f32 %v1074, %v1338
        %v1388 = vperm.slane %v481, 0
        %v1389 = vperm.slane %v481, 1
        %v1390 = vperm.slane %v481, 2
        %v1391 = vperm.slane %v481, 3
        %v1392 = vperm.slane %v481, 4
        %v1393 = vperm.slane %v481, 5
        %v1394 = vperm.slane %v481, 6
        %v1395 = vperm.slane %v481, 7
        %v1404 = vmul.f32 %v1363, %v1388
        %v1405 = vmul.f32 %v1364, %v1389
        %v1406 = vmul.f32 %v1365, %v1390
        %v1407 = vmul.f32 %v1366, %v1391
        %v1408 = vmul.f32 %v1367, %v1392
        %v1409 = vmul.f32 %v1368, %v1393
        %v1410 = vmul.f32 %v1369, %v1394
        %v1411 = vmul.f32 %v1370, %v1395
        %v1412 = vmul.f32 %v1371, %v1388
        %v1413 = vmul.f32 %v1372, %v1389
        %v1414 = vmul.f32 %v1373, %v1390
        %v1415 = vmul.f32 %v1374, %v1391
        %v1416 = vmul.f32 %v1375, %v1392
        %v1417 = vmul.f32 %v1376, %v1393
        %v1418 = vmul.f32 %v1377, %v1394
        %v1419 = vmul.f32 %v1378, %v1395
        %v1420 = vmul.f32 %v1379, %v1388
        %v1421 = vmul.f32 %v1380, %v1389
        %v1422 = vmul.f32 %v1381, %v1390
        %v1423 = vmul.f32 %v1382, %v1391
        %v1424 = vmul.f32 %v1383, %v1392
        %v1425 = vmul.f32 %v1384, %v1393
        %v1426 = vmul.f32 %v1385, %v1394
        %v1427 = vmul.f32 %v1386, %v1395
        %v1428 = vadd.f32 %v1339, %v1404
        %v1429 = vadd.f32 %v1340, %v1405
        %v1430 = vadd.f32 %v1341, %v1406
        %v1431 = vadd.f32 %v1342, %v1407
        %v1432 = vadd.f32 %v1343, %v1408
        %v1433 = vadd.f32 %v1344, %v1409
        %v1434 = vadd.f32 %v1345, %v1410
        %v1435 = vadd.f32 %v1346, %v1411
        %v1436 = vadd.f32 %v1347, %v1412
        %v1437 = vadd.f32 %v1348, %v1413
        %v1438 = vadd.f32 %v1349, %v1414
        %v1439 = vadd.f32 %v1350, %v1415
        %v1440 = vadd.f32 %v1351, %v1416
        %v1441 = vadd.f32 %v1352, %v1417
        %v1442 = vadd.f32 %v1353, %v1418
        %v1443 = vadd.f32 %v1354, %v1419
        %v1444 = vadd.f32 %v1355, %v1420
        %v1445 = vadd.f32 %v1356, %v1421
        %v1446 = vadd.f32 %v1357, %v1422
        %v1447 = vadd.f32 %v1358, %v1423
        %v1448 = vadd.f32 %v1359, %v1424
        %v1449 = vadd.f32 %v1360, %v1425
        %v1450 = vadd.f32 %v1361, %v1426
        %v1451 = vadd.f32 %v1362, %v1427
        %1452 = vst [vmem:[%s437] sm:$0xff] %v1428
        %1453 = vst [vmem:[%s437 + $0x8] sm:$0xff] %v1429
        %1454 = vst [vmem:[%s437 + $0x10] sm:$0xff] %v1430
        %1455 = vst [vmem:[%s437 + $0x18] sm:$0xff] %v1431
        %1456 = vst [vmem:[%s437 + $0x20] sm:$0xff] %v1432
        %1457 = vst [vmem:[%s437 + $0x28] sm:$0xff] %v1433
        %1458 = vst [vmem:[%s437 + $0x30] sm:$0xff] %v1434
        %1459 = vst [vmem:[%s437 + $0x38] sm:$0xff] %v1435
        %1460 = vst [vmem:[%s437 + $0x40] sm:$0xff] %v1436
        %1461 = vst [vmem:[%s437 + $0x48] sm:$0xff] %v1437
        %1462 = vst [vmem:[%s437 + $0x50] sm:$0xff] %v1438
        %1463 = vst [vmem:[%s437 + $0x58] sm:$0xff] %v1439
        %1464 = vst [vmem:[%s437 + $0x60] sm:$0xff] %v1440
        %1465 = vst [vmem:[%s437 + $0x68] sm:$0xff] %v1441
        %1466 = vst [vmem:[%s437 + $0x70] sm:$0xff] %v1442
        %1467 = vst [vmem:[%s437 + $0x78] sm:$0xff] %v1443
        %1468 = vst [vmem:[%s437 + $0x80] sm:$0xf] %v1444
        %1469 = vst [vmem:[%s437 + $0x88] sm:$0xf] %v1445
        %1470 = vst [vmem:[%s437 + $0x90] sm:$0xf] %v1446
        %1471 = vst [vmem:[%s437 + $0x98] sm:$0xf] %v1447
        %1472 = vst [vmem:[%s437 + $0xa0] sm:$0xf] %v1448
        %1473 = vst [vmem:[%s437 + $0xa8] sm:$0xf] %v1449
        %1474 = vst [vmem:[%s437 + $0xb0] sm:$0xf] %v1450
        %1475 = vst [vmem:[%s437 + $0xb8] sm:$0xf] %v1451
        %v1476 = vld [vmem:[%s441] sm:$0xff]
        %v1477 = vadd.f32 %v1476, %v478
        %1478 = vst [vmem:[%s441] sm:$0xff] %v1477
        %p1479 = scmp.lt.s32.totalorder %s22, 1
        %s1480 = scalar_select %p1479, %s22, 1
        %s1481 = smul.addr %s1480, 8
        %s1482 = smul.addr %s1481, 4
        %s1483 = scalar_lea.vmem %s4, %s1482
        %p1484 = scmp.lt.s32.totalorder %s22, 1
        %s1485 = scalar_select %p1484, %s22, 1
        %s1486 = smul.addr %s1485, 24
        %s1487 = smul.addr %s1486, 8
        %s1488 = scalar_lea.vmem %s5, %s1487
        %p1489 = scmp.lt.s32.totalorder %s22, 1
        %s1490 = scalar_select %p1489, %s22, 1
        %s1491 = smul.addr %s1490, 8
        %s1492 = scalar_lea.vmem %s6, %s1491
        // Predicated region
        $region64: #{focal_loss_forward.1} parent=54 // pred_check
          %p1493 = pneg %p160
        $region65: #{focal_loss_forward.1} parent=54 // pred_check_branch
          %1495 = sbr.rel (%p1493) target = $region67
        $region66: #{focal_loss_forward.1} parent=54 // pred_region
          _
        $region67: #{focal_loss_forward.1} parent=54 // pred_fallthru
          _
        // Predicated region
        $region68: #{focal_loss_forward.1} parent=54 // pred_check
          %p1496 = pneg %p186
        $region69: #{focal_loss_forward.1} parent=54 // pred_check_branch
          %1498 = sbr.rel (%p1496) target = $region71
        $region70: #{focal_loss_forward.1} parent=54 // pred_region
          _
        $region71: #{focal_loss_forward.1} parent=54 // pred_fallthru
          _
        // Predicated region
        $region72: #{focal_loss_forward.1} parent=54 // pred_check
          %p1499 = pneg %p212
        $region73: #{focal_loss_forward.1} parent=54 // pred_check_branch
          %1501 = sbr.rel (%p1499) target = $region75
        $region74: #{focal_loss_forward.1} parent=54 // pred_region
          _
        $region75: #{focal_loss_forward.1} parent=54 // pred_fallthru
          _
      $region55: #{focal_loss_forward.1} parent=5 // pred_fallthru
        _
      %p1502 = scmp.le.s32.totalorder 2, %s13
      // Predicated region
      $region76: #{focal_loss_forward.1} parent=5 // pred_check
        %p1503 = pneg %p1502
      $region77: #{focal_loss_forward.1} parent=5 // pred_check_branch
        %1505 = sbr.rel (%p1503) target = $region79
      $region78: #{focal_loss_forward.1} parent=5 // pred_region
        %s1506 = ssub.s32 %s13, 2
        // Predicated region
        $region80: #{focal_loss_forward.1} parent=78 // pred_check
          %p1507 = pneg %p166
        $region81: #{focal_loss_forward.1} parent=78 // pred_check_branch
          %1509 = sbr.rel (%p1507) target = $region83
        $region82: #{focal_loss_forward.1} parent=78 // pred_region
          %p1510 = scmp.lt.s32.totalorder %s24, 1
          %s1511 = scalar_select %p1510, %s24, 1
          %s1512 = smul.addr %s1511, 8
          %s1513 = smul.addr %s1512, 4
          %s1514 = scalar_lea.vmem %s4, %s1513
        $region83: #{focal_loss_forward.1} parent=78 // pred_fallthru
          _
        // Predicated region
        $region84: #{focal_loss_forward.1} parent=78 // pred_check
          %p1515 = pneg %p192
        $region85: #{focal_loss_forward.1} parent=78 // pred_check_branch
          %1517 = sbr.rel (%p1515) target = $region87
        $region86: #{focal_loss_forward.1} parent=78 // pred_region
          %p1518 = scmp.lt.s32.totalorder %s24, 1
          %s1519 = scalar_select %p1518, %s24, 1
          %s1520 = smul.addr %s1519, 24
          %s1521 = smul.addr %s1520, 8
          %s1522 = scalar_lea.vmem %s5, %s1521
        $region87: #{focal_loss_forward.1} parent=78 // pred_fallthru
          _
        // Predicated region
        $region88: #{focal_loss_forward.1} parent=78 // pred_check
          %p1523 = pneg %p218
        $region89: #{focal_loss_forward.1} parent=78 // pred_check_branch
          %1525 = sbr.rel (%p1523) target = $region91
        $region90: #{focal_loss_forward.1} parent=78 // pred_region
          %p1526 = scmp.lt.s32.totalorder %s24, 1
          %s1527 = scalar_select %p1526, %s24, 1
          %s1528 = smul.addr %s1527, 8
          %s1529 = scalar_lea.vmem %s6, %s1528
        $region91: #{focal_loss_forward.1} parent=78 // pred_fallthru
          _
      $region79: #{focal_loss_forward.1} parent=5 // pred_fallthru
        _
    $region6: #{focal_loss_forward.1} parent=1 // loop_footer
      %s17 = sadd.s32 1, %s13
    $region7: #{focal_loss_forward.1} parent=1 // loop_footer_branch
      %12 = sbr.rel target = $region3
    $region8: #{focal_loss_forward.1} parent=1 // loop_exit
      _

</llo_original>
